<compile_context>
chip_gen: v7x
topology: tpu7x:2x2x1
jax: 0.10.0
libtpu: 0.0.40
codegen_flags: <defaults>
</compile_context>

<pallas_src>
import functools

import jax
import jax.numpy as jnp
from jax import lax
from jax.experimental import pallas as pl
from jax.experimental.pallas import tpu as pltpu


def _round_up(n, m):
    return ((n + m - 1) // m) * m


# -----------------------------------------------------------------------------
# Fused kernel: one grid step == `time_chunk` RNN time steps.
# -----------------------------------------------------------------------------
def _ctrnn_fused_kernel(x_ref, wxm_ref, wxa_ref, w3_ref, ctx0_ref,
                        out_ref, ctxf_ref,
                        cp_sc, act_sc, ctxall_sc, ctx_sc,
                        *, seq_len, time_chunk, batch_pad, num_steps,
                        n_groups, alpha, beta_mult, beta_power):
    """Refs:
      x_ref    : (tb*Bp, I)   input rows for this time chunk (time-major, flat)
      wxm_ref  : (I, Mp)      folded input->context_portion weight (resident)
      wxa_ref  : (I, Mp)      folded input->actionable weight (resident)
      w3_ref   : (O, Mp, Mp)  context2context_map, group-major (resident)
      ctx0_ref : (Bp, Mp)     initial context (read at chunk 0 only)
      out_ref  : (tb*Bp, O)   per-step outputs for this chunk
      ctxf_ref : (Bp, Mp)     final context (written at the last chunk)
      cp_sc / act_sc / ctxall_sc : (tb*Bp, Mp) f32 VMEM scratch
      ctx_sc   : (Bp, Mp) f32 context carried across grid steps
    """
    c = pl.program_id(0)
    rows = time_chunk * batch_pad

    @pl.when(c == 0)
    def _():
        ctx_sc[...] = ctx0_ref[...]

    # ---- fused, folded input projections for the whole chunk (MXU) ---------
    # cp = x @ (W_e2m @ W_i2e)^T, act = x @ (W_e2a @ W_i2e)^T; one K-tile each.
    x = x_ref[...]                                                   # (rows, I)
    cp_sc[...] = jnp.dot(x, wxm_ref[...], preferred_element_type=jnp.float32)
    act_sc[...] = jnp.dot(x, wxa_ref[...], preferred_element_type=jnp.float32)

    # ---- serial part: VPU/EUP-only context recurrence ----------------------
    def time_step(i, ctx):
        r0 = pl.multiple_of(i * batch_pad, 8)
        cp = cp_sc[pl.ds(r0, batch_pad), :]                          # (Bp, Mp)
        # ||context_portion|| is invariant across the num_steps inner loop.
        cpn = jnp.sqrt(jnp.sum(cp * cp, axis=-1, keepdims=True))

        def inner(_, ctx_in):
            cn = jnp.sqrt(jnp.sum(ctx_in * ctx_in, axis=-1, keepdims=True))
            # NOTE: 0/0 -> NaN exactly as in the PyTorch reference (only
            # possible for an all-zero input row with a zero context).
            base = beta_mult * (cpn / (cpn + cn))
            if beta_power == 1.0:            # module init value: skip exp/log
                beta = alpha * base
            else:
                # float pow for non-negative base (relies on exp(-inf) = 0).
                beta = alpha * jnp.exp(beta_power * jnp.log(base))
            beta = jnp.clip(beta, 0.0, 1.0)
            return (1.0 - beta) * ctx_in + beta * cp

        ctx_new = lax.fori_loop(0, num_steps, inner, ctx, unroll=True)
        # Time-padding guard: steps past the true sequence length must not
        # advance the carried context.
        valid = (c * time_chunk + i) < seq_len
        ctx_next = jnp.where(valid, ctx_new, ctx)
        ctxall_sc[pl.ds(r0, batch_pad), :] = ctx_next
        return ctx_next

    ctx = lax.fori_loop(0, time_chunk, time_step, ctx_sc[...],
                        unroll=(True if time_chunk <= 16 else 8))
    ctx_sc[...] = ctx

    # ---- batched output projection for the whole chunk ---------------------
    # For each output group o: one (tb*Bp, Mp) x (Mp, Mp) MXU matmul followed
    # by an elementwise multiply with the actionable portion and an XLU lane
    # reduce.  (Replaces the per-step 8-row matmuls and the 0/1 segment-sum
    # matmul of the previous version.)
    ctx_all = ctxall_sc[...]                                         # (rows, Mp)
    act_all = act_sc[...]                                            # (rows, Mp)
    n_out = out_ref.shape[-1]
    col = lax.broadcasted_iota(jnp.int32, (rows, n_out), 1)
    out = jnp.zeros((rows, n_out), jnp.float32)
    for o in range(n_groups):                                        # static loop
        cmap_o = jnp.dot(ctx_all, w3_ref[o],
                         preferred_element_type=jnp.float32)         # (rows, Mp)
        s_o = jnp.sum(cmap_o * act_all, axis=-1, keepdims=True)      # (rows, 1)
        out = out + jnp.where(col == o, s_o, 0.0)
    out_ref[...] = out

    @pl.when(c == pl.num_programs(0) - 1)
    def _():
        ctxf_ref[...] = ctx


# -----------------------------------------------------------------------------
# Wrapper
# -----------------------------------------------------------------------------
def context_subspace_rnn_forward(x, w_i2e, w_e2m, w_e2a, w_c2c, context=None,
                                 *, alpha=1.0, beta_mult=1.0, beta_power=1.0,
                                 num_steps=1, time_chunk=32):
    """Pallas forward for ContextInputSubspaceRNNNet.

    x     : (T, B, input_size)
    w_i2e : (embedding_size, input_size)            input2embedding.weight
    w_e2m : (memory_size, embedding_size)           embedding2memory.weight
    w_e2a : (memory_size, embedding_size)           embedding2actionable.weight
    w_c2c : (memory_size*output_size, memory_size)  context2context_map.weight
    context: (B, memory_size) or None
    Returns (outputs (T, B, output_size), final_context (B, memory_size)).
    """
    f32 = jnp.float32
    x = jnp.asarray(x, f32)
    T, B, d_in = x.shape
    M = w_e2m.shape[0]
    O = w_c2c.shape[0] // M

    # ---- pad to sublane/lane granularity ------------------------------------
    Bp = _round_up(max(B, 8), 8)
    Mp = _round_up(M, 128)

    # ---- time chunking: pad T (mask in kernel) instead of shrinking tb ------
    tb = max(1, min(int(time_chunk), _round_up(T, 8)))
    T_pad = _round_up(T, tb)
    n_chunks = T_pad // tb
    rows = tb * Bp

    # ---- fold the chained input projections (exact up to fp rounding) -------
    hp = lax.Precision.HIGHEST
    w_xm = jnp.dot(jnp.asarray(w_e2m, f32), jnp.asarray(w_i2e, f32),
                   precision=hp).T                                    # (I, M)
    w_xa = jnp.dot(jnp.asarray(w_e2a, f32), jnp.asarray(w_i2e, f32),
                   precision=hp).T                                    # (I, M)
    w_xm = jnp.pad(w_xm, ((0, 0), (0, Mp - M)))                       # (I, Mp)
    w_xa = jnp.pad(w_xa, ((0, 0), (0, Mp - M)))                       # (I, Mp)

    # context2context_map: torch's .view(B, O, M) => flat row index o*M + m.
    # Repack as (O, Mp_in, Mp_out) so cmap_o = ctx @ w3[o].
    w_r = jnp.asarray(w_c2c, f32).reshape(O, M, M)                    # [o, m, j]
    w3 = jnp.transpose(w_r, (0, 2, 1))                                # [o, j, m]
    w3 = jnp.pad(w3, ((0, 0), (0, Mp - M), (0, Mp - M)))              # (O, Mp, Mp)

    # Pad input: time to T_pad, batch to Bp; flatten to time-major rows.
    x_p = jnp.pad(x, ((0, T_pad - T), (0, Bp - B), (0, 0)))
    x_flat = x_p.reshape(T_pad * Bp, d_in)

    if context is None:
        ctx0 = jnp.zeros((Bp, Mp), f32)
    else:
        ctx0 = jnp.pad(jnp.asarray(context, f32), ((0, Bp - B), (0, Mp - M)))

    kernel = functools.partial(
        _ctrnn_fused_kernel,
        seq_len=T, time_chunk=tb, batch_pad=Bp, num_steps=int(num_steps),
        n_groups=O, alpha=float(alpha), beta_mult=float(beta_mult),
        beta_power=float(beta_power))

    flops = (4 * T_pad * Bp * d_in * Mp              # input projections
             + 2 * T_pad * Bp * Mp * Mp * O          # cmap matmuls
             + 2 * T_pad * Bp * Mp * O               # act multiply + reduce
             + 10 * T_pad * Bp * Mp * int(num_steps))
    bytes_accessed = 4 * (T_pad * Bp * d_in + 2 * d_in * Mp + O * Mp * Mp
                          + 2 * Bp * Mp + T_pad * Bp * O + Bp * Mp)

    out_flat, ctxf_p = pl.pallas_call(
        kernel,
        out_shape=(
            jax.ShapeDtypeStruct((T_pad * Bp, O), f32),
            jax.ShapeDtypeStruct((Bp, Mp), f32),
        ),
        grid=(n_chunks,),
        in_specs=[
            pl.BlockSpec((rows, d_in), lambda c: (c, 0)),     # input rows
            pl.BlockSpec((d_in, Mp), lambda c: (0, 0)),       # folded W_xm
            pl.BlockSpec((d_in, Mp), lambda c: (0, 0)),       # folded W_xa
            pl.BlockSpec((O, Mp, Mp), lambda c: (0, 0, 0)),   # context2context
            pl.BlockSpec((Bp, Mp), lambda c: (0, 0)),         # initial context
        ],
        out_specs=(
            pl.BlockSpec((rows, O), lambda c: (c, 0)),        # per-step outputs
            pl.BlockSpec((Bp, Mp), lambda c: (0, 0)),         # final context
        ),
        scratch_shapes=[
            pltpu.VMEM((rows, Mp), f32),    # context portion for the chunk
            pltpu.VMEM((rows, Mp), f32),    # actionable portion for the chunk
            pltpu.VMEM((rows, Mp), f32),    # per-step contexts for the chunk
            pltpu.VMEM((Bp, Mp), f32),      # context carried across chunks
        ],
        compiler_params=pltpu.CompilerParams(
            # Time is a true recurrence: strictly sequential grid axis.
            dimension_semantics=("arbitrary",)),
        cost_estimate=pl.CostEstimate(
            flops=int(flops),
            transcendentals=int(2 * T_pad * Bp * int(num_steps)),
            bytes_accessed=int(bytes_accessed)),
    )(x_flat, w_xm, w_xa, w3, ctx0)

    out = out_flat.reshape(T_pad, Bp, O)[:T, :B, :]
    return out, ctxf_p[:B, :M]


# -----------------------------------------------------------------------------
# Pure-JAX reference mirroring the PyTorch forward exactly.
# -----------------------------------------------------------------------------
def context_subspace_rnn_reference(x, w_i2e, w_e2m, w_e2a, w_c2c, context=None,
                                   *, alpha=1.0, beta_mult=1.0, beta_power=1.0,
                                   num_steps=1):
    T, B, _ = x.shape
    M = w_e2m.shape[0]
    O = w_c2c.shape[0] // M
    hp = lax.Precision.HIGHEST
    if context is None:
        context = jnp.zeros((B, M), jnp.float32)
    outs = []
    for i in range(T):
        out = None
        for _ in range(num_steps):
            emb = jnp.dot(x[i], w_i2e.T, precision=hp)
            cp = jnp.dot(emb, w_e2m.T, precision=hp)
            act = jnp.dot(emb, w_e2a.T, precision=hp)
            cpn = jnp.sqrt(jnp.sum(cp * cp, axis=1, keepdims=True))
            cn = jnp.sqrt(jnp.sum(context * context, axis=1, keepdims=True))
            beta = alpha * (beta_mult * (cpn / (cpn + cn))) ** beta_power
            beta = jnp.clip(beta, 0.0, 1.0)
            context = (1.0 - beta) * context + beta * cp
            cmap = jnp.dot(context, w_c2c.T, precision=hp).reshape(B, O, M)
            out = jnp.sum(cmap * act[:, None, :], axis=-1)
        outs.append(out)
    return jnp.stack(outs, axis=0), context


if __name__ == "__main__":
    seq_len, batch = 8, 2
    input_size, memory_size, embedding_size, output_size = 4, 32, 16, 8
    dt = 20.0
    alpha = dt / 100.0        # module: alpha = dt / self.tau (tau = 100)
    beta_mult = 1.0           # nn.Parameter init values in the module
    beta_power = 1.0

    key = jax.random.PRNGKey(0)
    k_x, k_x2, k_c, k_ie, k_em, k_ea, k_cc = jax.random.split(key, 7)

    def linear_weight(k, out_f, in_f):
        # PyTorch nn.Linear default init: U(-1/sqrt(fan_in), 1/sqrt(fan_in)).
        bound = 1.0 / (in_f ** 0.5)
        return jax.random.uniform(k, (out_f, in_f), minval=-bound,
                                  maxval=bound, dtype=jnp.float32)

    w_i2e = linear_weight(k_ie, embedding_size, input_size)
    w_e2m = linear_weight(k_em, memory_size, embedding_size)
    w_e2a = linear_weight(k_ea, memory_size, embedding_size)
    w_c2c = linear_weight(k_cc, memory_size * output_size, memory_size)

    # ---- case 1: module defaults (zero initial context, num_steps=1) -------
    x1 = jax.random.normal(k_x, (seq_len, batch, input_size), dtype=jnp.float32)
    out1, ctx1 = context_subspace_rnn_forward(
        x1, w_i2e, w_e2m, w_e2a, w_c2c, context=None,
        alpha=alpha, beta_mult=beta_mult, beta_power=beta_power, num_steps=1)
    out1, ctx1 = jax.block_until_ready((out1, ctx1))

    ref_out1, ref_ctx1 = context_subspace_rnn_reference(
        x1, w_i2e, w_e2m, w_e2a, w_c2c, context=None,
        alpha=alpha, beta_mult=beta_mult, beta_power=beta_power, num_steps=1)

    assert out1.shape == (seq_len, batch, output_size), out1.shape
    assert ctx1.shape == (batch, memory_size), ctx1.shape
    assert bool(jnp.all(jnp.isfinite(out1))) and bool(jnp.all(jnp.isfinite(ctx1)))
    # Tolerance absorbs MXU f32-pass rounding vs the HIGHEST-precision reference.
    assert jnp.allclose(out1, ref_out1, atol=1e-3, rtol=1e-3), (
        float(jnp.max(jnp.abs(out1 - ref_out1))))
    assert jnp.allclose(ctx1, ref_ctx1, atol=1e-3, rtol=1e-3), (
        float(jnp.max(jnp.abs(ctx1 - ref_ctx1))))

    # ---- case 2: ragged T (exercises time padding), given context, steps=2 --
    t2 = 5
    x2 = jax.random.normal(k_x2, (t2, batch, input_size), dtype=jnp.float32)
    ctx_in = 0.1 * jax.random.normal(k_c, (batch, memory_size), dtype=jnp.float32)
    out2, ctx2 = context_subspace_rnn_forward(
        x2, w_i2e, w_e2m, w_e2a, w_c2c, context=ctx_in,
        alpha=alpha, beta_mult=beta_mult, beta_power=beta_power, num_steps=2)
    out2, ctx2 = jax.block_until_ready((out2, ctx2))

    ref_out2, ref_ctx2 = context_subspace_rnn_reference(
        x2, w_i2e, w_e2m, w_e2a, w_c2c, context=ctx_in,
        alpha=alpha, beta_mult=beta_mult, beta_power=beta_power, num_steps=2)

    assert out2.shape == (t2, batch, output_size), out2.shape
    assert jnp.allclose(out2, ref_out2, atol=1e-3, rtol=1e-3), (
        float(jnp.max(jnp.abs(out2 - ref_out2))))
    assert jnp.allclose(ctx2, ref_ctx2, atol=1e-3, rtol=1e-3), (
        float(jnp.max(jnp.abs(ctx2 - ref_ctx2))))

    print("KERNEL_OK")
</pallas_src>

<mosaic_0001>
module attributes {stable_mosaic.version = 11 : i64} {
  func.func @_ctrnn_fused_kernel(%arg0: i32, %arg1: memref<64x4xf32, #tpu.memory_space<vmem>>, %arg2: memref<4x128xf32, #tpu.memory_space<vmem>>, %arg3: memref<4x128xf32, #tpu.memory_space<vmem>>, %arg4: memref<8x128x128xf32, #tpu.memory_space<vmem>>, %arg5: memref<8x128xf32, #tpu.memory_space<vmem>>, %arg6: memref<64x8xf32, #tpu.memory_space<vmem>>, %arg7: memref<8x128xf32, #tpu.memory_space<vmem>>, %arg8: memref<64x128xf32, #tpu.memory_space<vmem>>, %arg9: memref<64x128xf32, #tpu.memory_space<vmem>>, %arg10: memref<64x128xf32, #tpu.memory_space<vmem>>, %arg11: memref<8x128xf32, #tpu.memory_space<vmem>>) attributes {dimension_semantics = [#tpu.dimension_semantics<arbitrary>], iteration_bounds = array<i64: 1>, scalar_prefetch = 0 : i64, scratch_operands = 4 : i64, tpu.core_type = #tpu.core_type<tc>, window_params = [{transform_indices = @transform_0, window_bounds = array<i64: 64, 4>}, {pipeline_mode = #tpu.pipeline_mode<synchronous>, transform_indices = @transform_1, window_bounds = array<i64: 4, 128>}, {pipeline_mode = #tpu.pipeline_mode<synchronous>, transform_indices = @transform_2, window_bounds = array<i64: 4, 128>}, {pipeline_mode = #tpu.pipeline_mode<synchronous>, transform_indices = @transform_3, window_bounds = array<i64: 8, 128, 128>}, {pipeline_mode = #tpu.pipeline_mode<synchronous>, transform_indices = @transform_4, window_bounds = array<i64: 8, 128>}, {transform_indices = @transform_5, window_bounds = array<i64: 64, 8>}, {pipeline_mode = #tpu.pipeline_mode<synchronous>, transform_indices = @transform_6, window_bounds = array<i64: 8, 128>}]} {
    %c0_i32 = arith.constant 0 : i32
    %0 = arith.cmpi eq, %arg0, %c0_i32 : i32
    %1 = arith.extui %0 : i1 to i32
    %c0_i32_0 = arith.constant 0 : i32
    %2 = arith.cmpi ne, %1, %c0_i32_0 : i32
    scf.if %2 {
      %c0_178 = arith.constant 0 : index
      %c0_179 = arith.constant 0 : index
      %404 = vector.load %arg5[%c0_178, %c0_179] : memref<8x128xf32, #tpu.memory_space<vmem>>, vector<8x128xf32>
      %c0_180 = arith.constant 0 : index
      %c0_181 = arith.constant 0 : index
      %405 = vector.load %arg11[%c0_180, %c0_181] : memref<8x128xf32, #tpu.memory_space<vmem>>, vector<8x128xf32>
      tpu.vector_store %arg11[%c0_180, %c0_181], %404 {strides = array<i32>} : memref<8x128xf32, #tpu.memory_space<vmem>>, vector<8x128xf32>,
    } else {
    }
    %c0 = arith.constant 0 : index
    %c0_1 = arith.constant 0 : index
    %3 = vector.load %arg1[%c0, %c0_1] : memref<64x4xf32, #tpu.memory_space<vmem>>, vector<64x4xf32>
    %c0_2 = arith.constant 0 : index
    %c0_3 = arith.constant 0 : index
    %4 = vector.load %arg2[%c0_2, %c0_3] : memref<4x128xf32, #tpu.memory_space<vmem>>, vector<4x128xf32>
    %cst = arith.constant dense<0.000000e+00> : vector<64x128xf32>
    %5 = tpu.matmul %3, %4, %cst {dimension_numbers = #tpu.dot_dimension_numbers<[1], [0], [0], [1], [0, 0, 1, 1], [], []>} : vector<64x4xf32>, vector<4x128xf32>, vector<64x128xf32> -> vector<64x128xf32>
    %c0_4 = arith.constant 0 : index
    %c0_5 = arith.constant 0 : index
    %6 = vector.load %arg8[%c0_4, %c0_5] : memref<64x128xf32, #tpu.memory_space<vmem>>, vector<64x128xf32>
    tpu.vector_store %arg8[%c0_4, %c0_5], %5 {strides = array<i32>} : memref<64x128xf32, #tpu.memory_space<vmem>>, vector<64x128xf32>,
    %c0_6 = arith.constant 0 : index
    %c0_7 = arith.constant 0 : index
    %7 = vector.load %arg3[%c0_6, %c0_7] : memref<4x128xf32, #tpu.memory_space<vmem>>, vector<4x128xf32>
    %cst_8 = arith.constant dense<0.000000e+00> : vector<64x128xf32>
    %8 = tpu.matmul %3, %7, %cst_8 {dimension_numbers = #tpu.dot_dimension_numbers<[1], [0], [0], [1], [0, 0, 1, 1], [], []>} : vector<64x4xf32>, vector<4x128xf32>, vector<64x128xf32> -> vector<64x128xf32>
    %c0_9 = arith.constant 0 : index
    %c0_10 = arith.constant 0 : index
    %9 = vector.load %arg9[%c0_9, %c0_10] : memref<64x128xf32, #tpu.memory_space<vmem>>, vector<64x128xf32>
    tpu.vector_store %arg9[%c0_9, %c0_10], %8 {strides = array<i32>} : memref<64x128xf32, #tpu.memory_space<vmem>>, vector<64x128xf32>,
    %c0_11 = arith.constant 0 : index
    %c0_12 = arith.constant 0 : index
    %10 = vector.load %arg11[%c0_11, %c0_12] : memref<8x128xf32, #tpu.memory_space<vmem>>, vector<8x128xf32>
    %c0_i32_13 = arith.constant 0 : i32
    %c8_i32 = arith.constant 8 : i32
    %11 = arith.muli %c0_i32_13, %c8_i32 : i32
    %12 = tpu.assume_multiple %11, 8 : i32
    %13 = arith.index_cast %12 : i32 to index
    %c0_14 = arith.constant 0 : index
    %14 = vector.load %arg8[%13, %c0_14] : memref<64x128xf32, #tpu.memory_space<vmem>>, vector<8x128xf32>
    %15 = arith.mulf %14, %14 : vector<8x128xf32>
    %cst_15 = arith.constant dense<0.000000e+00> : vector<8xf32>
    %16 = vector.multi_reduction <add>, %15, %cst_15 [1] : vector<8x128xf32> to vector<8xf32>
    %17 = vector.shape_cast %16 : vector<8xf32> to vector<8x1xf32>
    %18 = math.sqrt %17 : vector<8x1xf32>
    %c0_i32_16 = arith.constant 0 : i32
    %19 = arith.mulf %10, %10 : vector<8x128xf32>
    %cst_17 = arith.constant dense<0.000000e+00> : vector<8xf32>
    %20 = vector.multi_reduction <add>, %19, %cst_17 [1] : vector<8x128xf32> to vector<8xf32>
    %21 = vector.shape_cast %20 : vector<8xf32> to vector<8x1xf32>
    %22 = math.sqrt %21 : vector<8x1xf32>
    %23 = arith.addf %18, %22 : vector<8x1xf32>
    %24 = arith.divf %18, %23 : vector<8x1xf32>
    %cst_18 = arith.constant 1.000000e+00 : f32
    %25 = vector.broadcast %cst_18 : f32 to vector<8x1xf32>
    %26 = arith.mulf %25, %24 : vector<8x1xf32>
    %cst_19 = arith.constant 2.000000e-01 : f32
    %27 = vector.broadcast %cst_19 : f32 to vector<8x1xf32>
    %28 = arith.mulf %27, %26 : vector<8x1xf32>
    %cst_20 = arith.constant 0.000000e+00 : f32
    %cst_21 = arith.constant 1.000000e+00 : f32
    %29 = vector.broadcast %cst_20 : f32 to vector<8x1xf32>
    %30 = arith.maximumf %29, %28 : vector<8x1xf32>
    %31 = vector.broadcast %cst_21 : f32 to vector<8x1xf32>
    %32 = arith.minimumf %31, %30 : vector<8x1xf32>
    %cst_22 = arith.constant 1.000000e+00 : f32
    %33 = vector.broadcast %cst_22 : f32 to vector<8x1xf32>
    %34 = arith.subf %33, %32 : vector<8x1xf32>
    %35 = vector.broadcast %34 : vector<8x1xf32> to vector<8x128xf32>
    %36 = arith.mulf %35, %10 : vector<8x128xf32>
    %37 = vector.broadcast %32 : vector<8x1xf32> to vector<8x128xf32>
    %38 = arith.mulf %37, %14 : vector<8x128xf32>
    %39 = arith.addf %36, %38 : vector<8x128xf32>
    %c8_i32_23 = arith.constant 8 : i32
    %40 = arith.muli %arg0, %c8_i32_23 : i32
    %41 = arith.addi %40, %c0_i32_13 : i32
    %c8_i32_24 = arith.constant 8 : i32
    %42 = arith.cmpi slt, %41, %c8_i32_24 : i32
    %43 = arith.select %42, %39, %10 : vector<8x128xf32>
    %44 = arith.index_cast %12 : i32 to index
    %c0_25 = arith.constant 0 : index
    %45 = vector.load %arg10[%44, %c0_25] : memref<64x128xf32, #tpu.memory_space<vmem>>, vector<8x128xf32>
    tpu.vector_store %arg10[%44, %c0_25], %43 {strides = array<i32>} : memref<64x128xf32, #tpu.memory_space<vmem>>, vector<8x128xf32>,
    %c1_i32 = arith.constant 1 : i32
    %c8_i32_26 = arith.constant 8 : i32
    %46 = arith.muli %c1_i32, %c8_i32_26 : i32
    %47 = tpu.assume_multiple %46, 8 : i32
    %48 = arith.index_cast %47 : i32 to index
    %c0_27 = arith.constant 0 : index
    %49 = vector.load %arg8[%48, %c0_27] : memref<64x128xf32, #tpu.memory_space<vmem>>, vector<8x128xf32>
    %50 = arith.mulf %49, %49 : vector<8x128xf32>
    %cst_28 = arith.constant dense<0.000000e+00> : vector<8xf32>
    %51 = vector.multi_reduction <add>, %50, %cst_28 [1] : vector<8x128xf32> to vector<8xf32>
    %52 = vector.shape_cast %51 : vector<8xf32> to vector<8x1xf32>
    %53 = math.sqrt %52 : vector<8x1xf32>
    %c0_i32_29 = arith.constant 0 : i32
    %54 = arith.mulf %43, %43 : vector<8x128xf32>
    %cst_30 = arith.constant dense<0.000000e+00> : vector<8xf32>
    %55 = vector.multi_reduction <add>, %54, %cst_30 [1] : vector<8x128xf32> to vector<8xf32>
    %56 = vector.shape_cast %55 : vector<8xf32> to vector<8x1xf32>
    %57 = math.sqrt %56 : vector<8x1xf32>
    %58 = arith.addf %53, %57 : vector<8x1xf32>
    %59 = arith.divf %53, %58 : vector<8x1xf32>
    %cst_31 = arith.constant 1.000000e+00 : f32
    %60 = vector.broadcast %cst_31 : f32 to vector<8x1xf32>
    %61 = arith.mulf %60, %59 : vector<8x1xf32>
    %cst_32 = arith.constant 2.000000e-01 : f32
    %62 = vector.broadcast %cst_32 : f32 to vector<8x1xf32>
    %63 = arith.mulf %62, %61 : vector<8x1xf32>
    %cst_33 = arith.constant 0.000000e+00 : f32
    %cst_34 = arith.constant 1.000000e+00 : f32
    %64 = vector.broadcast %cst_33 : f32 to vector<8x1xf32>
    %65 = arith.maximumf %64, %63 : vector<8x1xf32>
    %66 = vector.broadcast %cst_34 : f32 to vector<8x1xf32>
    %67 = arith.minimumf %66, %65 : vector<8x1xf32>
    %cst_35 = arith.constant 1.000000e+00 : f32
    %68 = vector.broadcast %cst_35 : f32 to vector<8x1xf32>
    %69 = arith.subf %68, %67 : vector<8x1xf32>
    %70 = vector.broadcast %69 : vector<8x1xf32> to vector<8x128xf32>
    %71 = arith.mulf %70, %43 : vector<8x128xf32>
    %72 = vector.broadcast %67 : vector<8x1xf32> to vector<8x128xf32>
    %73 = arith.mulf %72, %49 : vector<8x128xf32>
    %74 = arith.addf %71, %73 : vector<8x128xf32>
    %c8_i32_36 = arith.constant 8 : i32
    %75 = arith.muli %arg0, %c8_i32_36 : i32
    %76 = arith.addi %75, %c1_i32 : i32
    %c8_i32_37 = arith.constant 8 : i32
    %77 = arith.cmpi slt, %76, %c8_i32_37 : i32
    %78 = arith.select %77, %74, %43 : vector<8x128xf32>
    %79 = arith.index_cast %47 : i32 to index
    %c0_38 = arith.constant 0 : index
    %80 = vector.load %arg10[%79, %c0_38] : memref<64x128xf32, #tpu.memory_space<vmem>>, vector<8x128xf32>
    tpu.vector_store %arg10[%79, %c0_38], %78 {strides = array<i32>} : memref<64x128xf32, #tpu.memory_space<vmem>>, vector<8x128xf32>,
    %c2_i32 = arith.constant 2 : i32
    %c8_i32_39 = arith.constant 8 : i32
    %81 = arith.muli %c2_i32, %c8_i32_39 : i32
    %82 = tpu.assume_multiple %81, 8 : i32
    %83 = arith.index_cast %82 : i32 to index
    %c0_40 = arith.constant 0 : index
    %84 = vector.load %arg8[%83, %c0_40] : memref<64x128xf32, #tpu.memory_space<vmem>>, vector<8x128xf32>
    %85 = arith.mulf %84, %84 : vector<8x128xf32>
    %cst_41 = arith.constant dense<0.000000e+00> : vector<8xf32>
    %86 = vector.multi_reduction <add>, %85, %cst_41 [1] : vector<8x128xf32> to vector<8xf32>
    %87 = vector.shape_cast %86 : vector<8xf32> to vector<8x1xf32>
    %88 = math.sqrt %87 : vector<8x1xf32>
    %c0_i32_42 = arith.constant 0 : i32
    %89 = arith.mulf %78, %78 : vector<8x128xf32>
    %cst_43 = arith.constant dense<0.000000e+00> : vector<8xf32>
    %90 = vector.multi_reduction <add>, %89, %cst_43 [1] : vector<8x128xf32> to vector<8xf32>
    %91 = vector.shape_cast %90 : vector<8xf32> to vector<8x1xf32>
    %92 = math.sqrt %91 : vector<8x1xf32>
    %93 = arith.addf %88, %92 : vector<8x1xf32>
    %94 = arith.divf %88, %93 : vector<8x1xf32>
    %cst_44 = arith.constant 1.000000e+00 : f32
    %95 = vector.broadcast %cst_44 : f32 to vector<8x1xf32>
    %96 = arith.mulf %95, %94 : vector<8x1xf32>
    %cst_45 = arith.constant 2.000000e-01 : f32
    %97 = vector.broadcast %cst_45 : f32 to vector<8x1xf32>
    %98 = arith.mulf %97, %96 : vector<8x1xf32>
    %cst_46 = arith.constant 0.000000e+00 : f32
    %cst_47 = arith.constant 1.000000e+00 : f32
    %99 = vector.broadcast %cst_46 : f32 to vector<8x1xf32>
    %100 = arith.maximumf %99, %98 : vector<8x1xf32>
    %101 = vector.broadcast %cst_47 : f32 to vector<8x1xf32>
    %102 = arith.minimumf %101, %100 : vector<8x1xf32>
    %cst_48 = arith.constant 1.000000e+00 : f32
    %103 = vector.broadcast %cst_48 : f32 to vector<8x1xf32>
    %104 = arith.subf %103, %102 : vector<8x1xf32>
    %105 = vector.broadcast %104 : vector<8x1xf32> to vector<8x128xf32>
    %106 = arith.mulf %105, %78 : vector<8x128xf32>
    %107 = vector.broadcast %102 : vector<8x1xf32> to vector<8x128xf32>
    %108 = arith.mulf %107, %84 : vector<8x128xf32>
    %109 = arith.addf %106, %108 : vector<8x128xf32>
    %c8_i32_49 = arith.constant 8 : i32
    %110 = arith.muli %arg0, %c8_i32_49 : i32
    %111 = arith.addi %110, %c2_i32 : i32
    %c8_i32_50 = arith.constant 8 : i32
    %112 = arith.cmpi slt, %111, %c8_i32_50 : i32
    %113 = arith.select %112, %109, %78 : vector<8x128xf32>
    %114 = arith.index_cast %82 : i32 to index
    %c0_51 = arith.constant 0 : index
    %115 = vector.load %arg10[%114, %c0_51] : memref<64x128xf32, #tpu.memory_space<vmem>>, vector<8x128xf32>
    tpu.vector_store %arg10[%114, %c0_51], %113 {strides = array<i32>} : memref<64x128xf32, #tpu.memory_space<vmem>>, vector<8x128xf32>,
    %c3_i32 = arith.constant 3 : i32
    %c8_i32_52 = arith.constant 8 : i32
    %116 = arith.muli %c3_i32, %c8_i32_52 : i32
    %117 = tpu.assume_multiple %116, 8 : i32
    %118 = arith.index_cast %117 : i32 to index
    %c0_53 = arith.constant 0 : index
    %119 = vector.load %arg8[%118, %c0_53] : memref<64x128xf32, #tpu.memory_space<vmem>>, vector<8x128xf32>
    %120 = arith.mulf %119, %119 : vector<8x128xf32>
    %cst_54 = arith.constant dense<0.000000e+00> : vector<8xf32>
    %121 = vector.multi_reduction <add>, %120, %cst_54 [1] : vector<8x128xf32> to vector<8xf32>
    %122 = vector.shape_cast %121 : vector<8xf32> to vector<8x1xf32>
    %123 = math.sqrt %122 : vector<8x1xf32>
    %c0_i32_55 = arith.constant 0 : i32
    %124 = arith.mulf %113, %113 : vector<8x128xf32>
    %cst_56 = arith.constant dense<0.000000e+00> : vector<8xf32>
    %125 = vector.multi_reduction <add>, %124, %cst_56 [1] : vector<8x128xf32> to vector<8xf32>
    %126 = vector.shape_cast %125 : vector<8xf32> to vector<8x1xf32>
    %127 = math.sqrt %126 : vector<8x1xf32>
    %128 = arith.addf %123, %127 : vector<8x1xf32>
    %129 = arith.divf %123, %128 : vector<8x1xf32>
    %cst_57 = arith.constant 1.000000e+00 : f32
    %130 = vector.broadcast %cst_57 : f32 to vector<8x1xf32>
    %131 = arith.mulf %130, %129 : vector<8x1xf32>
    %cst_58 = arith.constant 2.000000e-01 : f32
    %132 = vector.broadcast %cst_58 : f32 to vector<8x1xf32>
    %133 = arith.mulf %132, %131 : vector<8x1xf32>
    %cst_59 = arith.constant 0.000000e+00 : f32
    %cst_60 = arith.constant 1.000000e+00 : f32
    %134 = vector.broadcast %cst_59 : f32 to vector<8x1xf32>
    %135 = arith.maximumf %134, %133 : vector<8x1xf32>
    %136 = vector.broadcast %cst_60 : f32 to vector<8x1xf32>
    %137 = arith.minimumf %136, %135 : vector<8x1xf32>
    %cst_61 = arith.constant 1.000000e+00 : f32
    %138 = vector.broadcast %cst_61 : f32 to vector<8x1xf32>
    %139 = arith.subf %138, %137 : vector<8x1xf32>
    %140 = vector.broadcast %139 : vector<8x1xf32> to vector<8x128xf32>
    %141 = arith.mulf %140, %113 : vector<8x128xf32>
    %142 = vector.broadcast %137 : vector<8x1xf32> to vector<8x128xf32>
    %143 = arith.mulf %142, %119 : vector<8x128xf32>
    %144 = arith.addf %141, %143 : vector<8x128xf32>
    %c8_i32_62 = arith.constant 8 : i32
    %145 = arith.muli %arg0, %c8_i32_62 : i32
    %146 = arith.addi %145, %c3_i32 : i32
    %c8_i32_63 = arith.constant 8 : i32
    %147 = arith.cmpi slt, %146, %c8_i32_63 : i32
    %148 = arith.select %147, %144, %113 : vector<8x128xf32>
    %149 = arith.index_cast %117 : i32 to index
    %c0_64 = arith.constant 0 : index
    %150 = vector.load %arg10[%149, %c0_64] : memref<64x128xf32, #tpu.memory_space<vmem>>, vector<8x128xf32>
    tpu.vector_store %arg10[%149, %c0_64], %148 {strides = array<i32>} : memref<64x128xf32, #tpu.memory_space<vmem>>, vector<8x128xf32>,
    %c4_i32 = arith.constant 4 : i32
    %c8_i32_65 = arith.constant 8 : i32
    %151 = arith.muli %c4_i32, %c8_i32_65 : i32
    %152 = tpu.assume_multiple %151, 8 : i32
    %153 = arith.index_cast %152 : i32 to index
    %c0_66 = arith.constant 0 : index
    %154 = vector.load %arg8[%153, %c0_66] : memref<64x128xf32, #tpu.memory_space<vmem>>, vector<8x128xf32>
    %155 = arith.mulf %154, %154 : vector<8x128xf32>
    %cst_67 = arith.constant dense<0.000000e+00> : vector<8xf32>
    %156 = vector.multi_reduction <add>, %155, %cst_67 [1] : vector<8x128xf32> to vector<8xf32>
    %157 = vector.shape_cast %156 : vector<8xf32> to vector<8x1xf32>
    %158 = math.sqrt %157 : vector<8x1xf32>
    %c0_i32_68 = arith.constant 0 : i32
    %159 = arith.mulf %148, %148 : vector<8x128xf32>
    %cst_69 = arith.constant dense<0.000000e+00> : vector<8xf32>
    %160 = vector.multi_reduction <add>, %159, %cst_69 [1] : vector<8x128xf32> to vector<8xf32>
    %161 = vector.shape_cast %160 : vector<8xf32> to vector<8x1xf32>
    %162 = math.sqrt %161 : vector<8x1xf32>
    %163 = arith.addf %158, %162 : vector<8x1xf32>
    %164 = arith.divf %158, %163 : vector<8x1xf32>
    %cst_70 = arith.constant 1.000000e+00 : f32
    %165 = vector.broadcast %cst_70 : f32 to vector<8x1xf32>
    %166 = arith.mulf %165, %164 : vector<8x1xf32>
    %cst_71 = arith.constant 2.000000e-01 : f32
    %167 = vector.broadcast %cst_71 : f32 to vector<8x1xf32>
    %168 = arith.mulf %167, %166 : vector<8x1xf32>
    %cst_72 = arith.constant 0.000000e+00 : f32
    %cst_73 = arith.constant 1.000000e+00 : f32
    %169 = vector.broadcast %cst_72 : f32 to vector<8x1xf32>
    %170 = arith.maximumf %169, %168 : vector<8x1xf32>
    %171 = vector.broadcast %cst_73 : f32 to vector<8x1xf32>
    %172 = arith.minimumf %171, %170 : vector<8x1xf32>
    %cst_74 = arith.constant 1.000000e+00 : f32
    %173 = vector.broadcast %cst_74 : f32 to vector<8x1xf32>
    %174 = arith.subf %173, %172 : vector<8x1xf32>
    %175 = vector.broadcast %174 : vector<8x1xf32> to vector<8x128xf32>
    %176 = arith.mulf %175, %148 : vector<8x128xf32>
    %177 = vector.broadcast %172 : vector<8x1xf32> to vector<8x128xf32>
    %178 = arith.mulf %177, %154 : vector<8x128xf32>
    %179 = arith.addf %176, %178 : vector<8x128xf32>
    %c8_i32_75 = arith.constant 8 : i32
    %180 = arith.muli %arg0, %c8_i32_75 : i32
    %181 = arith.addi %180, %c4_i32 : i32
    %c8_i32_76 = arith.constant 8 : i32
    %182 = arith.cmpi slt, %181, %c8_i32_76 : i32
    %183 = arith.select %182, %179, %148 : vector<8x128xf32>
    %184 = arith.index_cast %152 : i32 to index
    %c0_77 = arith.constant 0 : index
    %185 = vector.load %arg10[%184, %c0_77] : memref<64x128xf32, #tpu.memory_space<vmem>>, vector<8x128xf32>
    tpu.vector_store %arg10[%184, %c0_77], %183 {strides = array<i32>} : memref<64x128xf32, #tpu.memory_space<vmem>>, vector<8x128xf32>,
    %c5_i32 = arith.constant 5 : i32
    %c8_i32_78 = arith.constant 8 : i32
    %186 = arith.muli %c5_i32, %c8_i32_78 : i32
    %187 = tpu.assume_multiple %186, 8 : i32
    %188 = arith.index_cast %187 : i32 to index
    %c0_79 = arith.constant 0 : index
    %189 = vector.load %arg8[%188, %c0_79] : memref<64x128xf32, #tpu.memory_space<vmem>>, vector<8x128xf32>
    %190 = arith.mulf %189, %189 : vector<8x128xf32>
    %cst_80 = arith.constant dense<0.000000e+00> : vector<8xf32>
    %191 = vector.multi_reduction <add>, %190, %cst_80 [1] : vector<8x128xf32> to vector<8xf32>
    %192 = vector.shape_cast %191 : vector<8xf32> to vector<8x1xf32>
    %193 = math.sqrt %192 : vector<8x1xf32>
    %c0_i32_81 = arith.constant 0 : i32
    %194 = arith.mulf %183, %183 : vector<8x128xf32>
    %cst_82 = arith.constant dense<0.000000e+00> : vector<8xf32>
    %195 = vector.multi_reduction <add>, %194, %cst_82 [1] : vector<8x128xf32> to vector<8xf32>
    %196 = vector.shape_cast %195 : vector<8xf32> to vector<8x1xf32>
    %197 = math.sqrt %196 : vector<8x1xf32>
    %198 = arith.addf %193, %197 : vector<8x1xf32>
    %199 = arith.divf %193, %198 : vector<8x1xf32>
    %cst_83 = arith.constant 1.000000e+00 : f32
    %200 = vector.broadcast %cst_83 : f32 to vector<8x1xf32>
    %201 = arith.mulf %200, %199 : vector<8x1xf32>
    %cst_84 = arith.constant 2.000000e-01 : f32
    %202 = vector.broadcast %cst_84 : f32 to vector<8x1xf32>
    %203 = arith.mulf %202, %201 : vector<8x1xf32>
    %cst_85 = arith.constant 0.000000e+00 : f32
    %cst_86 = arith.constant 1.000000e+00 : f32
    %204 = vector.broadcast %cst_85 : f32 to vector<8x1xf32>
    %205 = arith.maximumf %204, %203 : vector<8x1xf32>
    %206 = vector.broadcast %cst_86 : f32 to vector<8x1xf32>
    %207 = arith.minimumf %206, %205 : vector<8x1xf32>
    %cst_87 = arith.constant 1.000000e+00 : f32
    %208 = vector.broadcast %cst_87 : f32 to vector<8x1xf32>
    %209 = arith.subf %208, %207 : vector<8x1xf32>
    %210 = vector.broadcast %209 : vector<8x1xf32> to vector<8x128xf32>
    %211 = arith.mulf %210, %183 : vector<8x128xf32>
    %212 = vector.broadcast %207 : vector<8x1xf32> to vector<8x128xf32>
    %213 = arith.mulf %212, %189 : vector<8x128xf32>
    %214 = arith.addf %211, %213 : vector<8x128xf32>
    %c8_i32_88 = arith.constant 8 : i32
    %215 = arith.muli %arg0, %c8_i32_88 : i32
    %216 = arith.addi %215, %c5_i32 : i32
    %c8_i32_89 = arith.constant 8 : i32
    %217 = arith.cmpi slt, %216, %c8_i32_89 : i32
    %218 = arith.select %217, %214, %183 : vector<8x128xf32>
    %219 = arith.index_cast %187 : i32 to index
    %c0_90 = arith.constant 0 : index
    %220 = vector.load %arg10[%219, %c0_90] : memref<64x128xf32, #tpu.memory_space<vmem>>, vector<8x128xf32>
    tpu.vector_store %arg10[%219, %c0_90], %218 {strides = array<i32>} : memref<64x128xf32, #tpu.memory_space<vmem>>, vector<8x128xf32>,
    %c6_i32 = arith.constant 6 : i32
    %c8_i32_91 = arith.constant 8 : i32
    %221 = arith.muli %c6_i32, %c8_i32_91 : i32
    %222 = tpu.assume_multiple %221, 8 : i32
    %223 = arith.index_cast %222 : i32 to index
    %c0_92 = arith.constant 0 : index
    %224 = vector.load %arg8[%223, %c0_92] : memref<64x128xf32, #tpu.memory_space<vmem>>, vector<8x128xf32>
    %225 = arith.mulf %224, %224 : vector<8x128xf32>
    %cst_93 = arith.constant dense<0.000000e+00> : vector<8xf32>
    %226 = vector.multi_reduction <add>, %225, %cst_93 [1] : vector<8x128xf32> to vector<8xf32>
    %227 = vector.shape_cast %226 : vector<8xf32> to vector<8x1xf32>
    %228 = math.sqrt %227 : vector<8x1xf32>
    %c0_i32_94 = arith.constant 0 : i32
    %229 = arith.mulf %218, %218 : vector<8x128xf32>
    %cst_95 = arith.constant dense<0.000000e+00> : vector<8xf32>
    %230 = vector.multi_reduction <add>, %229, %cst_95 [1] : vector<8x128xf32> to vector<8xf32>
    %231 = vector.shape_cast %230 : vector<8xf32> to vector<8x1xf32>
    %232 = math.sqrt %231 : vector<8x1xf32>
    %233 = arith.addf %228, %232 : vector<8x1xf32>
    %234 = arith.divf %228, %233 : vector<8x1xf32>
    %cst_96 = arith.constant 1.000000e+00 : f32
    %235 = vector.broadcast %cst_96 : f32 to vector<8x1xf32>
    %236 = arith.mulf %235, %234 : vector<8x1xf32>
    %cst_97 = arith.constant 2.000000e-01 : f32
    %237 = vector.broadcast %cst_97 : f32 to vector<8x1xf32>
    %238 = arith.mulf %237, %236 : vector<8x1xf32>
    %cst_98 = arith.constant 0.000000e+00 : f32
    %cst_99 = arith.constant 1.000000e+00 : f32
    %239 = vector.broadcast %cst_98 : f32 to vector<8x1xf32>
    %240 = arith.maximumf %239, %238 : vector<8x1xf32>
    %241 = vector.broadcast %cst_99 : f32 to vector<8x1xf32>
    %242 = arith.minimumf %241, %240 : vector<8x1xf32>
    %cst_100 = arith.constant 1.000000e+00 : f32
    %243 = vector.broadcast %cst_100 : f32 to vector<8x1xf32>
    %244 = arith.subf %243, %242 : vector<8x1xf32>
    %245 = vector.broadcast %244 : vector<8x1xf32> to vector<8x128xf32>
    %246 = arith.mulf %245, %218 : vector<8x128xf32>
    %247 = vector.broadcast %242 : vector<8x1xf32> to vector<8x128xf32>
    %248 = arith.mulf %247, %224 : vector<8x128xf32>
    %249 = arith.addf %246, %248 : vector<8x128xf32>
    %c8_i32_101 = arith.constant 8 : i32
    %250 = arith.muli %arg0, %c8_i32_101 : i32
    %251 = arith.addi %250, %c6_i32 : i32
    %c8_i32_102 = arith.constant 8 : i32
    %252 = arith.cmpi slt, %251, %c8_i32_102 : i32
    %253 = arith.select %252, %249, %218 : vector<8x128xf32>
    %254 = arith.index_cast %222 : i32 to index
    %c0_103 = arith.constant 0 : index
    %255 = vector.load %arg10[%254, %c0_103] : memref<64x128xf32, #tpu.memory_space<vmem>>, vector<8x128xf32>
    tpu.vector_store %arg10[%254, %c0_103], %253 {strides = array<i32>} : memref<64x128xf32, #tpu.memory_space<vmem>>, vector<8x128xf32>,
    %c7_i32 = arith.constant 7 : i32
    %c8_i32_104 = arith.constant 8 : i32
    %256 = arith.muli %c7_i32, %c8_i32_104 : i32
    %257 = tpu.assume_multiple %256, 8 : i32
    %258 = arith.index_cast %257 : i32 to index
    %c0_105 = arith.constant 0 : index
    %259 = vector.load %arg8[%258, %c0_105] : memref<64x128xf32, #tpu.memory_space<vmem>>, vector<8x128xf32>
    %260 = arith.mulf %259, %259 : vector<8x128xf32>
    %cst_106 = arith.constant dense<0.000000e+00> : vector<8xf32>
    %261 = vector.multi_reduction <add>, %260, %cst_106 [1] : vector<8x128xf32> to vector<8xf32>
    %262 = vector.shape_cast %261 : vector<8xf32> to vector<8x1xf32>
    %263 = math.sqrt %262 : vector<8x1xf32>
    %c0_i32_107 = arith.constant 0 : i32
    %264 = arith.mulf %253, %253 : vector<8x128xf32>
    %cst_108 = arith.constant dense<0.000000e+00> : vector<8xf32>
    %265 = vector.multi_reduction <add>, %264, %cst_108 [1] : vector<8x128xf32> to vector<8xf32>
    %266 = vector.shape_cast %265 : vector<8xf32> to vector<8x1xf32>
    %267 = math.sqrt %266 : vector<8x1xf32>
    %268 = arith.addf %263, %267 : vector<8x1xf32>
    %269 = arith.divf %263, %268 : vector<8x1xf32>
    %cst_109 = arith.constant 1.000000e+00 : f32
    %270 = vector.broadcast %cst_109 : f32 to vector<8x1xf32>
    %271 = arith.mulf %270, %269 : vector<8x1xf32>
    %cst_110 = arith.constant 2.000000e-01 : f32
    %272 = vector.broadcast %cst_110 : f32 to vector<8x1xf32>
    %273 = arith.mulf %272, %271 : vector<8x1xf32>
    %cst_111 = arith.constant 0.000000e+00 : f32
    %cst_112 = arith.constant 1.000000e+00 : f32
    %274 = vector.broadcast %cst_111 : f32 to vector<8x1xf32>
    %275 = arith.maximumf %274, %273 : vector<8x1xf32>
    %276 = vector.broadcast %cst_112 : f32 to vector<8x1xf32>
    %277 = arith.minimumf %276, %275 : vector<8x1xf32>
    %cst_113 = arith.constant 1.000000e+00 : f32
    %278 = vector.broadcast %cst_113 : f32 to vector<8x1xf32>
    %279 = arith.subf %278, %277 : vector<8x1xf32>
    %280 = vector.broadcast %279 : vector<8x1xf32> to vector<8x128xf32>
    %281 = arith.mulf %280, %253 : vector<8x128xf32>
    %282 = vector.broadcast %277 : vector<8x1xf32> to vector<8x128xf32>
    %283 = arith.mulf %282, %259 : vector<8x128xf32>
    %284 = arith.addf %281, %283 : vector<8x128xf32>
    %c8_i32_114 = arith.constant 8 : i32
    %285 = arith.muli %arg0, %c8_i32_114 : i32
    %286 = arith.addi %285, %c7_i32 : i32
    %c8_i32_115 = arith.constant 8 : i32
    %287 = arith.cmpi slt, %286, %c8_i32_115 : i32
    %288 = arith.select %287, %284, %253 : vector<8x128xf32>
    %289 = arith.index_cast %257 : i32 to index
    %c0_116 = arith.constant 0 : index
    %290 = vector.load %arg10[%289, %c0_116] : memref<64x128xf32, #tpu.memory_space<vmem>>, vector<8x128xf32>
    tpu.vector_store %arg10[%289, %c0_116], %288 {strides = array<i32>} : memref<64x128xf32, #tpu.memory_space<vmem>>, vector<8x128xf32>,
    %c8_i32_117 = arith.constant 8 : i32
    %c0_118 = arith.constant 0 : index
    %c0_119 = arith.constant 0 : index
    %291 = vector.load %arg11[%c0_118, %c0_119] : memref<8x128xf32, #tpu.memory_space<vmem>>, vector<8x128xf32>
    tpu.vector_store %arg11[%c0_118, %c0_119], %288 {strides = array<i32>} : memref<8x128xf32, #tpu.memory_space<vmem>>, vector<8x128xf32>,
    %c0_120 = arith.constant 0 : index
    %c0_121 = arith.constant 0 : index
    %292 = vector.load %arg10[%c0_120, %c0_121] : memref<64x128xf32, #tpu.memory_space<vmem>>, vector<64x128xf32>
    %c0_122 = arith.constant 0 : index
    %c0_123 = arith.constant 0 : index
    %293 = vector.load %arg9[%c0_122, %c0_123] : memref<64x128xf32, #tpu.memory_space<vmem>>, vector<64x128xf32>
    %294 = tpu.iota {dimensions = array<i32: 1>} : vector<64x8xi32>
    %cst_124 = arith.constant 0.000000e+00 : f32
    %295 = vector.broadcast %cst_124 : f32 to vector<64x8xf32>
    %c0_125 = arith.constant 0 : index
    %c0_126 = arith.constant 0 : index
    %c0_127 = arith.constant 0 : index
    %296 = vector.load %arg4[%c0_125, %c0_126, %c0_127] : memref<8x128x128xf32, #tpu.memory_space<vmem>>, vector<1x128x128xf32>
    %297 = vector.shape_cast %296 : vector<1x128x128xf32> to vector<128x128xf32>
    %cst_128 = arith.constant dense<0.000000e+00> : vector<64x128xf32>
    %298 = tpu.matmul %292, %297, %cst_128 {dimension_numbers = #tpu.dot_dimension_numbers<[1], [0], [0], [1], [0, 0, 1, 1], [], []>} : vector<64x128xf32>, vector<128x128xf32>, vector<64x128xf32> -> vector<64x128xf32>
    %299 = arith.mulf %298, %293 : vector<64x128xf32>
    %cst_129 = arith.constant dense<0.000000e+00> : vector<64xf32>
    %300 = vector.multi_reduction <add>, %299, %cst_129 [1] : vector<64x128xf32> to vector<64xf32>
    %301 = vector.shape_cast %300 : vector<64xf32> to vector<64x1xf32>
    %c0_i32_130 = arith.constant 0 : i32
    %302 = vector.broadcast %c0_i32_130 : i32 to vector<64x8xi32>
    %303 = arith.cmpi eq, %294, %302 : vector<64x8xi32>
    %cst_131 = arith.constant 0.000000e+00 : f32
    %304 = vector.shape_cast %301 : vector<64x1xf32> to vector<64x1xf32>
    %305 = vector.broadcast %304 : vector<64x1xf32> to vector<64x8xf32>
    %306 = vector.broadcast %cst_131 : f32 to vector<64x8xf32>
    %307 = arith.select %303, %305, %306 : vector<64x8xi1>, vector<64x8xf32>
    %308 = arith.addf %295, %307 : vector<64x8xf32>
    %c1 = arith.constant 1 : index
    %c0_132 = arith.constant 0 : index
    %c0_133 = arith.constant 0 : index
    %309 = vector.load %arg4[%c1, %c0_132, %c0_133] : memref<8x128x128xf32, #tpu.memory_space<vmem>>, vector<1x128x128xf32>
    %310 = vector.shape_cast %309 : vector<1x128x128xf32> to vector<128x128xf32>
    %cst_134 = arith.constant dense<0.000000e+00> : vector<64x128xf32>
    %311 = tpu.matmul %292, %310, %cst_134 {dimension_numbers = #tpu.dot_dimension_numbers<[1], [0], [0], [1], [0, 0, 1, 1], [], []>} : vector<64x128xf32>, vector<128x128xf32>, vector<64x128xf32> -> vector<64x128xf32>
    %312 = arith.mulf %311, %293 : vector<64x128xf32>
    %cst_135 = arith.constant dense<0.000000e+00> : vector<64xf32>
    %313 = vector.multi_reduction <add>, %312, %cst_135 [1] : vector<64x128xf32> to vector<64xf32>
    %314 = vector.shape_cast %313 : vector<64xf32> to vector<64x1xf32>
    %c1_i32_136 = arith.constant 1 : i32
    %315 = vector.broadcast %c1_i32_136 : i32 to vector<64x8xi32>
    %316 = arith.cmpi eq, %294, %315 : vector<64x8xi32>
    %cst_137 = arith.constant 0.000000e+00 : f32
    %317 = vector.shape_cast %314 : vector<64x1xf32> to vector<64x1xf32>
    %318 = vector.broadcast %317 : vector<64x1xf32> to vector<64x8xf32>
    %319 = vector.broadcast %cst_137 : f32 to vector<64x8xf32>
    %320 = arith.select %316, %318, %319 : vector<64x8xi1>, vector<64x8xf32>
    %321 = arith.addf %308, %320 : vector<64x8xf32>
    %c2 = arith.constant 2 : index
    %c0_138 = arith.constant 0 : index
    %c0_139 = arith.constant 0 : index
    %322 = vector.load %arg4[%c2, %c0_138, %c0_139] : memref<8x128x128xf32, #tpu.memory_space<vmem>>, vector<1x128x128xf32>
    %323 = vector.shape_cast %322 : vector<1x128x128xf32> to vector<128x128xf32>
    %cst_140 = arith.constant dense<0.000000e+00> : vector<64x128xf32>
    %324 = tpu.matmul %292, %323, %cst_140 {dimension_numbers = #tpu.dot_dimension_numbers<[1], [0], [0], [1], [0, 0, 1, 1], [], []>} : vector<64x128xf32>, vector<128x128xf32>, vector<64x128xf32> -> vector<64x128xf32>
    %325 = arith.mulf %324, %293 : vector<64x128xf32>
    %cst_141 = arith.constant dense<0.000000e+00> : vector<64xf32>
    %326 = vector.multi_reduction <add>, %325, %cst_141 [1] : vector<64x128xf32> to vector<64xf32>
    %327 = vector.shape_cast %326 : vector<64xf32> to vector<64x1xf32>
    %c2_i32_142 = arith.constant 2 : i32
    %328 = vector.broadcast %c2_i32_142 : i32 to vector<64x8xi32>
    %329 = arith.cmpi eq, %294, %328 : vector<64x8xi32>
    %cst_143 = arith.constant 0.000000e+00 : f32
    %330 = vector.shape_cast %327 : vector<64x1xf32> to vector<64x1xf32>
    %331 = vector.broadcast %330 : vector<64x1xf32> to vector<64x8xf32>
    %332 = vector.broadcast %cst_143 : f32 to vector<64x8xf32>
    %333 = arith.select %329, %331, %332 : vector<64x8xi1>, vector<64x8xf32>
    %334 = arith.addf %321, %333 : vector<64x8xf32>
    %c3 = arith.constant 3 : index
    %c0_144 = arith.constant 0 : index
    %c0_145 = arith.constant 0 : index
    %335 = vector.load %arg4[%c3, %c0_144, %c0_145] : memref<8x128x128xf32, #tpu.memory_space<vmem>>, vector<1x128x128xf32>
    %336 = vector.shape_cast %335 : vector<1x128x128xf32> to vector<128x128xf32>
    %cst_146 = arith.constant dense<0.000000e+00> : vector<64x128xf32>
    %337 = tpu.matmul %292, %336, %cst_146 {dimension_numbers = #tpu.dot_dimension_numbers<[1], [0], [0], [1], [0, 0, 1, 1], [], []>} : vector<64x128xf32>, vector<128x128xf32>, vector<64x128xf32> -> vector<64x128xf32>
    %338 = arith.mulf %337, %293 : vector<64x128xf32>
    %cst_147 = arith.constant dense<0.000000e+00> : vector<64xf32>
    %339 = vector.multi_reduction <add>, %338, %cst_147 [1] : vector<64x128xf32> to vector<64xf32>
    %340 = vector.shape_cast %339 : vector<64xf32> to vector<64x1xf32>
    %c3_i32_148 = arith.constant 3 : i32
    %341 = vector.broadcast %c3_i32_148 : i32 to vector<64x8xi32>
    %342 = arith.cmpi eq, %294, %341 : vector<64x8xi32>
    %cst_149 = arith.constant 0.000000e+00 : f32
    %343 = vector.shape_cast %340 : vector<64x1xf32> to vector<64x1xf32>
    %344 = vector.broadcast %343 : vector<64x1xf32> to vector<64x8xf32>
    %345 = vector.broadcast %cst_149 : f32 to vector<64x8xf32>
    %346 = arith.select %342, %344, %345 : vector<64x8xi1>, vector<64x8xf32>
    %347 = arith.addf %334, %346 : vector<64x8xf32>
    %c4 = arith.constant 4 : index
    %c0_150 = arith.constant 0 : index
    %c0_151 = arith.constant 0 : index
    %348 = vector.load %arg4[%c4, %c0_150, %c0_151] : memref<8x128x128xf32, #tpu.memory_space<vmem>>, vector<1x128x128xf32>
    %349 = vector.shape_cast %348 : vector<1x128x128xf32> to vector<128x128xf32>
    %cst_152 = arith.constant dense<0.000000e+00> : vector<64x128xf32>
    %350 = tpu.matmul %292, %349, %cst_152 {dimension_numbers = #tpu.dot_dimension_numbers<[1], [0], [0], [1], [0, 0, 1, 1], [], []>} : vector<64x128xf32>, vector<128x128xf32>, vector<64x128xf32> -> vector<64x128xf32>
    %351 = arith.mulf %350, %293 : vector<64x128xf32>
    %cst_153 = arith.constant dense<0.000000e+00> : vector<64xf32>
    %352 = vector.multi_reduction <add>, %351, %cst_153 [1] : vector<64x128xf32> to vector<64xf32>
    %353 = vector.shape_cast %352 : vector<64xf32> to vector<64x1xf32>
    %c4_i32_154 = arith.constant 4 : i32
    %354 = vector.broadcast %c4_i32_154 : i32 to vector<64x8xi32>
    %355 = arith.cmpi eq, %294, %354 : vector<64x8xi32>
    %cst_155 = arith.constant 0.000000e+00 : f32
    %356 = vector.shape_cast %353 : vector<64x1xf32> to vector<64x1xf32>
    %357 = vector.broadcast %356 : vector<64x1xf32> to vector<64x8xf32>
    %358 = vector.broadcast %cst_155 : f32 to vector<64x8xf32>
    %359 = arith.select %355, %357, %358 : vector<64x8xi1>, vector<64x8xf32>
    %360 = arith.addf %347, %359 : vector<64x8xf32>
    %c5 = arith.constant 5 : index
    %c0_156 = arith.constant 0 : index
    %c0_157 = arith.constant 0 : index
    %361 = vector.load %arg4[%c5, %c0_156, %c0_157] : memref<8x128x128xf32, #tpu.memory_space<vmem>>, vector<1x128x128xf32>
    %362 = vector.shape_cast %361 : vector<1x128x128xf32> to vector<128x128xf32>
    %cst_158 = arith.constant dense<0.000000e+00> : vector<64x128xf32>
    %363 = tpu.matmul %292, %362, %cst_158 {dimension_numbers = #tpu.dot_dimension_numbers<[1], [0], [0], [1], [0, 0, 1, 1], [], []>} : vector<64x128xf32>, vector<128x128xf32>, vector<64x128xf32> -> vector<64x128xf32>
    %364 = arith.mulf %363, %293 : vector<64x128xf32>
    %cst_159 = arith.constant dense<0.000000e+00> : vector<64xf32>
    %365 = vector.multi_reduction <add>, %364, %cst_159 [1] : vector<64x128xf32> to vector<64xf32>
    %366 = vector.shape_cast %365 : vector<64xf32> to vector<64x1xf32>
    %c5_i32_160 = arith.constant 5 : i32
    %367 = vector.broadcast %c5_i32_160 : i32 to vector<64x8xi32>
    %368 = arith.cmpi eq, %294, %367 : vector<64x8xi32>
    %cst_161 = arith.constant 0.000000e+00 : f32
    %369 = vector.shape_cast %366 : vector<64x1xf32> to vector<64x1xf32>
    %370 = vector.broadcast %369 : vector<64x1xf32> to vector<64x8xf32>
    %371 = vector.broadcast %cst_161 : f32 to vector<64x8xf32>
    %372 = arith.select %368, %370, %371 : vector<64x8xi1>, vector<64x8xf32>
    %373 = arith.addf %360, %372 : vector<64x8xf32>
    %c6 = arith.constant 6 : index
    %c0_162 = arith.constant 0 : index
    %c0_163 = arith.constant 0 : index
    %374 = vector.load %arg4[%c6, %c0_162, %c0_163] : memref<8x128x128xf32, #tpu.memory_space<vmem>>, vector<1x128x128xf32>
    %375 = vector.shape_cast %374 : vector<1x128x128xf32> to vector<128x128xf32>
    %cst_164 = arith.constant dense<0.000000e+00> : vector<64x128xf32>
    %376 = tpu.matmul %292, %375, %cst_164 {dimension_numbers = #tpu.dot_dimension_numbers<[1], [0], [0], [1], [0, 0, 1, 1], [], []>} : vector<64x128xf32>, vector<128x128xf32>, vector<64x128xf32> -> vector<64x128xf32>
    %377 = arith.mulf %376, %293 : vector<64x128xf32>
    %cst_165 = arith.constant dense<0.000000e+00> : vector<64xf32>
    %378 = vector.multi_reduction <add>, %377, %cst_165 [1] : vector<64x128xf32> to vector<64xf32>
    %379 = vector.shape_cast %378 : vector<64xf32> to vector<64x1xf32>
    %c6_i32_166 = arith.constant 6 : i32
    %380 = vector.broadcast %c6_i32_166 : i32 to vector<64x8xi32>
    %381 = arith.cmpi eq, %294, %380 : vector<64x8xi32>
    %cst_167 = arith.constant 0.000000e+00 : f32
    %382 = vector.shape_cast %379 : vector<64x1xf32> to vector<64x1xf32>
    %383 = vector.broadcast %382 : vector<64x1xf32> to vector<64x8xf32>
    %384 = vector.broadcast %cst_167 : f32 to vector<64x8xf32>
    %385 = arith.select %381, %383, %384 : vector<64x8xi1>, vector<64x8xf32>
    %386 = arith.addf %373, %385 : vector<64x8xf32>
    %c7 = arith.constant 7 : index
    %c0_168 = arith.constant 0 : index
    %c0_169 = arith.constant 0 : index
    %387 = vector.load %arg4[%c7, %c0_168, %c0_169] : memref<8x128x128xf32, #tpu.memory_space<vmem>>, vector<1x128x128xf32>
    %388 = vector.shape_cast %387 : vector<1x128x128xf32> to vector<128x128xf32>
    %cst_170 = arith.constant dense<0.000000e+00> : vector<64x128xf32>
    %389 = tpu.matmul %292, %388, %cst_170 {dimension_numbers = #tpu.dot_dimension_numbers<[1], [0], [0], [1], [0, 0, 1, 1], [], []>} : vector<64x128xf32>, vector<128x128xf32>, vector<64x128xf32> -> vector<64x128xf32>
    %390 = arith.mulf %389, %293 : vector<64x128xf32>
    %cst_171 = arith.constant dense<0.000000e+00> : vector<64xf32>
    %391 = vector.multi_reduction <add>, %390, %cst_171 [1] : vector<64x128xf32> to vector<64xf32>
    %392 = vector.shape_cast %391 : vector<64xf32> to vector<64x1xf32>
    %c7_i32_172 = arith.constant 7 : i32
    %393 = vector.broadcast %c7_i32_172 : i32 to vector<64x8xi32>
    %394 = arith.cmpi eq, %294, %393 : vector<64x8xi32>
    %cst_173 = arith.constant 0.000000e+00 : f32
    %395 = vector.shape_cast %392 : vector<64x1xf32> to vector<64x1xf32>
    %396 = vector.broadcast %395 : vector<64x1xf32> to vector<64x8xf32>
    %397 = vector.broadcast %cst_173 : f32 to vector<64x8xf32>
    %398 = arith.select %394, %396, %397 : vector<64x8xi1>, vector<64x8xf32>
    %399 = arith.addf %386, %398 : vector<64x8xf32>
    %c0_174 = arith.constant 0 : index
    %c0_175 = arith.constant 0 : index
    %400 = vector.load %arg6[%c0_174, %c0_175] : memref<64x8xf32, #tpu.memory_space<vmem>>, vector<64x8xf32>
    tpu.vector_store %arg6[%c0_174, %c0_175], %399 {strides = array<i32>} : memref<64x8xf32, #tpu.memory_space<vmem>>, vector<64x8xf32>,
    %c0_i32_176 = arith.constant 0 : i32
    %401 = arith.cmpi eq, %arg0, %c0_i32_176 : i32
    %402 = arith.extui %401 : i1 to i32
    %c0_i32_177 = arith.constant 0 : i32
    %403 = arith.cmpi ne, %402, %c0_i32_177 : i32
    scf.if %403 {
      %c0_178 = arith.constant 0 : index
      %c0_179 = arith.constant 0 : index
      %404 = vector.load %arg7[%c0_178, %c0_179] : memref<8x128xf32, #tpu.memory_space<vmem>>, vector<8x128xf32>
      tpu.vector_store %arg7[%c0_178, %c0_179], %288 {strides = array<i32>} : memref<8x128xf32, #tpu.memory_space<vmem>>, vector<8x128xf32>,
    } else {
    }
    return
  }
  func.func @transform_0(%arg0: i32) -> (i32, i32) {
    %c0_i32 = arith.constant 0 : i32
    %c0_i32_0 = arith.constant 0 : i32
    return %arg0, %c0_i32 : i32, i32
  }
  func.func @transform_1(%arg0: i32) -> (i32, i32) {
    %c0_i32 = arith.constant 0 : i32
    %c0_i32_0 = arith.constant 0 : i32
    %c0_i32_1 = arith.constant 0 : i32
    return %c0_i32, %c0_i32_0 : i32, i32
  }
  func.func @transform_2(%arg0: i32) -> (i32, i32) {
    %c0_i32 = arith.constant 0 : i32
    %c0_i32_0 = arith.constant 0 : i32
    %c0_i32_1 = arith.constant 0 : i32
    return %c0_i32, %c0_i32_0 : i32, i32
  }
  func.func @transform_3(%arg0: i32) -> (i32, i32, i32) {
    %c0_i32 = arith.constant 0 : i32
    %c0_i32_0 = arith.constant 0 : i32
    %c0_i32_1 = arith.constant 0 : i32
    %c0_i32_2 = arith.constant 0 : i32
    return %c0_i32, %c0_i32_0, %c0_i32_1 : i32, i32, i32
  }
  func.func @transform_4(%arg0: i32) -> (i32, i32) {
    %c0_i32 = arith.constant 0 : i32
    %c0_i32_0 = arith.constant 0 : i32
    %c0_i32_1 = arith.constant 0 : i32
    return %c0_i32, %c0_i32_0 : i32, i32
  }
  func.func @transform_5(%arg0: i32) -> (i32, i32) {
    %c0_i32 = arith.constant 0 : i32
    %c0_i32_0 = arith.constant 0 : i32
    return %arg0, %c0_i32 : i32, i32
  }
  func.func @transform_6(%arg0: i32) -> (i32, i32) {
    %c0_i32 = arith.constant 0 : i32
    %c0_i32_0 = arith.constant 0 : i32
    %c0_i32_1 = arith.constant 0 : i32
    return %c0_i32, %c0_i32_0 : i32, i32
  }
}

</mosaic_0001>

<llo_original>
// kernel: tpu_custom_call.1
$region0: #{tpu_custom_call.1}
  #allocation0 [shape = 'u32[]', space=smem, size = 0x4, offset = 0x4, fixed_abs, tag = 'smem constant byte address 0x4 - core index']
  #allocation1 [shape = 'u32[144,128]{1,0:T(1,128)}', space=vmem, size = 0x12000, scoped, tag = 'internal scratch']
  #allocation2 [shape = 'f32[64,128]{1,0:T(8,128)}', space=vmem, size = 0x8000, scoped, tag = 'scratch operand']
  #allocation3 [shape = 'f32[64,128]{1,0:T(8,128)}', space=vmem, size = 0x8000, scoped, tag = 'scratch operand']
  #allocation4 [shape = 'f32[64,128]{1,0:T(8,128)}', space=vmem, size = 0x8000, scoped, tag = 'scratch operand']
  #allocation5 [shape = 'f32[8,128]{1,0:T(8,128)}', space=vmem, size = 0x1000, scoped, tag = 'scratch operand']
  %s0 = inlined_call_operand.vmem [shape: f32[64,4], index: 0, kind: input, shape index: {}]
  %s1 = inlined_call_operand.vmem [shape: f32[4,128], index: 1, kind: input, shape index: {}]
  %s2 = inlined_call_operand.vmem [shape: f32[4,128], index: 2, kind: input, shape index: {}]
  %s3 = inlined_call_operand.hbm [shape: f32[8,128,128], index: 3, kind: input, shape index: {}]
  %s4 = inlined_call_operand.vmem [shape: f32[8,128], index: 4, kind: input, shape index: {}]
  %s5 = inlined_call_operand.vmem [shape: f32[64,8], index: 5, kind: output, shape index: {0}]
  %s6 = inlined_call_operand.hbm [shape: f32[8,128], index: 6, kind: output, shape index: {1}]
  %7 = xla_tuple %s5, %s6
  %s8 = sld [smem:[#allocation0]]
  $region50: #{tpu_custom_call.1} parent=0
    _
  %s10 = ssub.s32 1, %s8
  %s11 = scalar_select 0, %s10, %s8
  $region1: #{tpu_custom_call.1} parent=0
    #allocation6 [shape = 'u8[524288]{0}', space=vmem, size = 0x80000, scoped, tag = 'input window, operand 3, single buffered']
    #allocation7 [shape = 's32[1]{0}', space=sflag, size = 0x4, scoped, tag = 'scoped memory for tpu_custom_call.1']
    #allocation8 [shape = 's32[1]{0}', space=sflag, size = 0x4, scoped, tag = 'scoped memory for tpu_custom_call.1']
    #allocation9 [shape = 'u8[4096]{0}', space=vmem, size = 0x1000, scoped, tag = 'output window, operand 1, single buffered']
    %12 = vsyncpa [#allocation7], 0
    %13 = vsyncpa [#allocation8], 0
    // Predicated region
    $region2: #{tpu_custom_call.1} parent=1 // pred_check
      _
    $region3: #{tpu_custom_call.1} parent=1 // pred_check_branch
      %15 = sbr.rel (0) target = $region5
    $region4: #{tpu_custom_call.1} parent=1 // pred_region
      _
    $region5: #{tpu_custom_call.1} parent=1 // pred_fallthru
      _
    // Predicated region
    $region6: #{tpu_custom_call.1} parent=1 // pred_check
      _
    $region7: #{tpu_custom_call.1} parent=1 // pred_check_branch
      %17 = sbr.rel (0) target = $region9
    $region8: #{tpu_custom_call.1} parent=1 // pred_region
      _
    $region9: #{tpu_custom_call.1} parent=1 // pred_fallthru
      _
    // Predicated region
    $region10: #{tpu_custom_call.1} parent=1 // pred_check
      _
    $region11: #{tpu_custom_call.1} parent=1 // pred_check_branch
      %19 = sbr.rel (0) target = $region13
    $region12: #{tpu_custom_call.1} parent=1 // pred_region
      _
    $region13: #{tpu_custom_call.1} parent=1 // pred_fallthru
      _
    // Predicated region
    $region14: #{tpu_custom_call.1} parent=1 // pred_check
      _
    $region15: #{tpu_custom_call.1} parent=1 // pred_check_branch
      %21 = sbr.rel (0) target = $region17
    $region16: #{tpu_custom_call.1} parent=1 // pred_region
      %s23 = ssub.s32 16384, 16384
      %24 = vsyncadd [#allocation7], %s23
      %s25 = sshll.u32 [#allocation6], 4
      %s26 = int_to_ptr.vmem [resolvable:$true] %s25
      %31 = dma.hbm_to_vmem [thread:$0]  %s3, 16384, %s26, [#allocation7], 128, 128, 8
    $region17: #{tpu_custom_call.1} parent=1 // pred_fallthru
      _
    // Predicated region
    $region18: #{tpu_custom_call.1} parent=1 // pred_check
      _
    $region19: #{tpu_custom_call.1} parent=1 // pred_check_branch
      %33 = sbr.rel (0) target = $region21
    $region20: #{tpu_custom_call.1} parent=1 // pred_region
      _
    $region21: #{tpu_custom_call.1} parent=1 // pred_fallthru
      _
    // Predicated region
    $region22: #{tpu_custom_call.1} parent=1 // pred_check
      _
    $region23: #{tpu_custom_call.1} parent=1 // pred_check_branch
      %35 = sbr.rel (0) target = $region25
    $region24: #{tpu_custom_call.1} parent=1 // pred_region
      %36 = dma.done [#allocation7], 16384
    $region25: #{tpu_custom_call.1} parent=1 // pred_fallthru
      _
    %p37 = scmp.eq.s32.totalorder 0, 0
    // Predicated region
    $region26: #{tpu_custom_call.1} parent=1 // pred_check
      %p38 = pneg %p37
    $region27: #{tpu_custom_call.1} parent=1 // pred_check_branch
      %40 = sbr.rel (%p38) target = $region29
    $region28: #{tpu_custom_call.1} parent=1 // pred_region
      %v41 = vld [vmem:[%s4] sm:$0xff]
      %42 = vst [vmem:[#allocation5] sm:$0xff] %v41
    $region29: #{tpu_custom_call.1} parent=1 // pred_fallthru
      _
    %v43 = vld [vmem:[%s0] sm:$0xff]
    %v44 = vld [vmem:[%s0 + $0x8] sm:$0xff]
    %v45 = vld [vmem:[%s0 + $0x10] sm:$0xff]
    %v46 = vld [vmem:[%s0 + $0x18] sm:$0xff]
    %v47 = vld [vmem:[%s0 + $0x20] sm:$0xff]
    %v48 = vld [vmem:[%s0 + $0x28] sm:$0xff]
    %v49 = vld [vmem:[%s0 + $0x30] sm:$0xff]
    %v50 = vld [vmem:[%s0 + $0x38] sm:$0xff]
    %v51 = vld [vmem:[%s1] sm:$0xf]
    %vm52 = vcmask 31744
    %v54 = vsel %vm52, %v43, 0
    %v57 = vsel %vm52, %v44, 0
    %v60 = vsel %vm52, %v45, 0
    %v63 = vsel %vm52, %v46, 0
    %v66 = vsel %vm52, %v47, 0
    %v69 = vsel %vm52, %v48, 0
    %v72 = vsel %vm52, %v49, 0
    %v75 = vsel %vm52, %v50, 0
    %vm77 = vcmask 1043456
    %v79 = vsel %vm77, %v51, 0
    %81 = vmatprep.subr.mxu0 0.0
    %82 = vmatpush1.msra.mxu0 %v79
    %83 = vmatprep.subr.mxu0 0.0
    %84 = vmatpush1.msra.mxu0 0.0
    %85 = vmatprep.subr.mxu0 0.0
    %86 = vmatpush1.msra.mxu0 0.0
    %87 = vmatprep.subr.mxu0 0.0
    %88 = vmatpush1.msra.mxu0 0.0
    %89 = vmatprep.subr.mxu0 0.0
    %90 = vmatpush1.msra.mxu0 0.0
    %91 = vmatprep.subr.mxu0 0.0
    %92 = vmatpush1.msra.mxu0 0.0
    %93 = vmatprep.subr.mxu0 0.0
    %94 = vmatpush1.msra.mxu0 0.0
    %95 = vmatprep.subr.mxu0 0.0
    %96 = vmatpush1.msra.mxu0 0.0
    %97 = vmatprep.subr.mxu0 0.0
    %98 = vmatpush1.msra.mxu0 0.0
    %99 = vmatprep.subr.mxu0 0.0
    %100 = vmatpush1.msra.mxu0 0.0
    %101 = vmatprep.subr.mxu0 0.0
    %102 = vmatpush1.msra.mxu0 0.0
    %103 = vmatprep.subr.mxu0 0.0
    %104 = vmatpush1.msra.mxu0 0.0
    %105 = vmatprep.subr.mxu0 0.0
    %106 = vmatpush1.msra.mxu0 0.0
    %107 = vmatprep.subr.mxu0 0.0
    %108 = vmatpush1.msra.mxu0 0.0
    %109 = vmatprep.subr.mxu0 0.0
    %110 = vmatpush1.msra.mxu0 0.0
    %111 = vmatprep.subr.mxu0 0.0
    %112 = vmatpush1.msra.mxu0 0.0
    %113 = vmatprep.subr.mxu0 0.0
    %114 = vmatpush1.msra.mxu0 0.0
    %115 = vmatprep.subr.mxu0 0.0
    %116 = vmatpush1.msra.mxu0 0.0
    %117 = vmatprep.subr.mxu0 0.0
    %118 = vmatpush1.msra.mxu0 0.0
    %119 = vmatprep.subr.mxu0 0.0
    %120 = vmatpush1.msra.mxu0 0.0
    %121 = vmatprep.subr.mxu0 0.0
    %122 = vmatpush1.msra.mxu0 0.0
    %123 = vmatprep.subr.mxu0 0.0
    %124 = vmatpush1.msra.mxu0 0.0
    %125 = vmatprep.subr.mxu0 0.0
    %126 = vmatpush1.msra.mxu0 0.0
    %127 = vmatprep.subr.mxu0 0.0
    %128 = vmatpush1.msra.mxu0 0.0
    %129 = vmatprep.subr.mxu0 0.0
    %130 = vmatpush1.msra.mxu0 0.0
    %131 = vmatprep.subr.mxu0 0.0
    %132 = vmatpush1.msra.mxu0 0.0
    %133 = vmatprep.subr.mxu0 0.0
    %134 = vmatpush1.msra.mxu0 0.0
    %135 = vmatprep.subr.mxu0 0.0
    %136 = vmatpush1.msra.mxu0 0.0
    %137 = vmatprep.subr.mxu0 0.0
    %138 = vmatpush1.msra.mxu0 0.0
    %139 = vmatprep.subr.mxu0 0.0
    %140 = vmatpush1.msra.mxu0 0.0
    %141 = vmatprep.subr.mxu0 0.0
    %142 = vmatpush1.msra.mxu0 0.0
    %143 = vmatprep.subr.mxu0 0.0
    %144 = vmatpush1.msra.mxu0 0.0
    %145 = vmatprep.mubr.f32.mxu0 0.0
    %146 = vmatmul.mubr.f32.gmra.mrb[0].mxu0 %v54
    %v147 = vpop.f32.mrb[0].mxu0
    %v148 = vadd.f32 0.0, %v147
    %v149 = vpop.f32.mrb[0].mxu0
    %150 = vmatprep.mubr.f32.mxu0 0.0
    %151 = vmatmul.mubr.f32.gmra.mrb[0].mxu0 %v57
    %v152 = vpop.f32.mrb[0].mxu0
    %v153 = vadd.f32 0.0, %v152
    %v154 = vpop.f32.mrb[0].mxu0
    %155 = vmatprep.mubr.f32.mxu0 0.0
    %156 = vmatmul.mubr.f32.gmra.mrb[0].mxu0 %v60
    %v157 = vpop.f32.mrb[0].mxu0
    %v158 = vadd.f32 0.0, %v157
    %v159 = vpop.f32.mrb[0].mxu0
    %160 = vmatprep.mubr.f32.mxu0 0.0
    %161 = vmatmul.mubr.f32.gmra.mrb[0].mxu0 %v63
    %v162 = vpop.f32.mrb[0].mxu0
    %v163 = vadd.f32 0.0, %v162
    %v164 = vpop.f32.mrb[0].mxu0
    %165 = vmatprep.mubr.f32.mxu0 0.0
    %166 = vmatmul.mubr.f32.gmra.mrb[0].mxu0 %v66
    %v167 = vpop.f32.mrb[0].mxu0
    %v168 = vadd.f32 0.0, %v167
    %v169 = vpop.f32.mrb[0].mxu0
    %170 = vmatprep.mubr.f32.mxu0 0.0
    %171 = vmatmul.mubr.f32.gmra.mrb[0].mxu0 %v69
    %v172 = vpop.f32.mrb[0].mxu0
    %v173 = vadd.f32 0.0, %v172
    %v174 = vpop.f32.mrb[0].mxu0
    %175 = vmatprep.mubr.f32.mxu0 0.0
    %176 = vmatmul.mubr.f32.gmra.mrb[0].mxu0 %v72
    %v177 = vpop.f32.mrb[0].mxu0
    %v178 = vadd.f32 0.0, %v177
    %v179 = vpop.f32.mrb[0].mxu0
    %180 = vmatprep.mubr.f32.mxu0 0.0
    %181 = vmatmul.mubr.f32.gmra.mrb[0].mxu0 %v75
    %v182 = vpop.f32.mrb[0].mxu0
    %v183 = vadd.f32 0.0, %v182
    %v184 = vpop.f32.mrb[0].mxu0
    %185 = vdwg.mxu0
    %186 = vst [vmem:[#allocation2] sm:$0xff] %v148
    %187 = vst [vmem:[#allocation2 + $0x8] sm:$0xff] %v153
    %188 = vst [vmem:[#allocation2 + $0x10] sm:$0xff] %v158
    %189 = vst [vmem:[#allocation2 + $0x18] sm:$0xff] %v163
    %190 = vst [vmem:[#allocation2 + $0x20] sm:$0xff] %v168
    %191 = vst [vmem:[#allocation2 + $0x28] sm:$0xff] %v173
    %192 = vst [vmem:[#allocation2 + $0x30] sm:$0xff] %v178
    %193 = vst [vmem:[#allocation2 + $0x38] sm:$0xff] %v183
    %v194 = vld [vmem:[%s2] sm:$0xf]
    %v196 = vsel %vm77, %v194, 0
    %198 = vmatprep.subr.mxu0 0.0
    %199 = vmatpush1.msra.mxu0 %v196
    %200 = vmatprep.subr.mxu0 0.0
    %201 = vmatpush1.msra.mxu0 0.0
    %202 = vmatprep.subr.mxu0 0.0
    %203 = vmatpush1.msra.mxu0 0.0
    %204 = vmatprep.subr.mxu0 0.0
    %205 = vmatpush1.msra.mxu0 0.0
    %206 = vmatprep.subr.mxu0 0.0
    %207 = vmatpush1.msra.mxu0 0.0
    %208 = vmatprep.subr.mxu0 0.0
    %209 = vmatpush1.msra.mxu0 0.0
    %210 = vmatprep.subr.mxu0 0.0
    %211 = vmatpush1.msra.mxu0 0.0
    %212 = vmatprep.subr.mxu0 0.0
    %213 = vmatpush1.msra.mxu0 0.0
    %214 = vmatprep.subr.mxu0 0.0
    %215 = vmatpush1.msra.mxu0 0.0
    %216 = vmatprep.subr.mxu0 0.0
    %217 = vmatpush1.msra.mxu0 0.0
    %218 = vmatprep.subr.mxu0 0.0
    %219 = vmatpush1.msra.mxu0 0.0
    %220 = vmatprep.subr.mxu0 0.0
    %221 = vmatpush1.msra.mxu0 0.0
    %222 = vmatprep.subr.mxu0 0.0
    %223 = vmatpush1.msra.mxu0 0.0
    %224 = vmatprep.subr.mxu0 0.0
    %225 = vmatpush1.msra.mxu0 0.0
    %226 = vmatprep.subr.mxu0 0.0
    %227 = vmatpush1.msra.mxu0 0.0
    %228 = vmatprep.subr.mxu0 0.0
    %229 = vmatpush1.msra.mxu0 0.0
    %230 = vmatprep.subr.mxu0 0.0
    %231 = vmatpush1.msra.mxu0 0.0
    %232 = vmatprep.subr.mxu0 0.0
    %233 = vmatpush1.msra.mxu0 0.0
    %234 = vmatprep.subr.mxu0 0.0
    %235 = vmatpush1.msra.mxu0 0.0
    %236 = vmatprep.subr.mxu0 0.0
    %237 = vmatpush1.msra.mxu0 0.0
    %238 = vmatprep.subr.mxu0 0.0
    %239 = vmatpush1.msra.mxu0 0.0
    %240 = vmatprep.subr.mxu0 0.0
    %241 = vmatpush1.msra.mxu0 0.0
    %242 = vmatprep.subr.mxu0 0.0
    %243 = vmatpush1.msra.mxu0 0.0
    %244 = vmatprep.subr.mxu0 0.0
    %245 = vmatpush1.msra.mxu0 0.0
    %246 = vmatprep.subr.mxu0 0.0
    %247 = vmatpush1.msra.mxu0 0.0
    %248 = vmatprep.subr.mxu0 0.0
    %249 = vmatpush1.msra.mxu0 0.0
    %250 = vmatprep.subr.mxu0 0.0
    %251 = vmatpush1.msra.mxu0 0.0
    %252 = vmatprep.subr.mxu0 0.0
    %253 = vmatpush1.msra.mxu0 0.0
    %254 = vmatprep.subr.mxu0 0.0
    %255 = vmatpush1.msra.mxu0 0.0
    %256 = vmatprep.subr.mxu0 0.0
    %257 = vmatpush1.msra.mxu0 0.0
    %258 = vmatprep.subr.mxu0 0.0
    %259 = vmatpush1.msra.mxu0 0.0
    %260 = vmatprep.subr.mxu0 0.0
    %261 = vmatpush1.msra.mxu0 0.0
    %262 = vmatprep.mubr.f32.mxu0 0.0
    %263 = vmatmul.mubr.f32.gmra.mrb[0].mxu0 %v54
    %v264 = vpop.f32.mrb[0].mxu0
    %v265 = vadd.f32 0.0, %v264
    %v266 = vpop.f32.mrb[0].mxu0
    %267 = vmatprep.mubr.f32.mxu0 0.0
    %268 = vmatmul.mubr.f32.gmra.mrb[0].mxu0 %v57
    %v269 = vpop.f32.mrb[0].mxu0
    %v270 = vadd.f32 0.0, %v269
    %v271 = vpop.f32.mrb[0].mxu0
    %272 = vmatprep.mubr.f32.mxu0 0.0
    %273 = vmatmul.mubr.f32.gmra.mrb[0].mxu0 %v60
    %v274 = vpop.f32.mrb[0].mxu0
    %v275 = vadd.f32 0.0, %v274
    %v276 = vpop.f32.mrb[0].mxu0
    %277 = vmatprep.mubr.f32.mxu0 0.0
    %278 = vmatmul.mubr.f32.gmra.mrb[0].mxu0 %v63
    %v279 = vpop.f32.mrb[0].mxu0
    %v280 = vadd.f32 0.0, %v279
    %v281 = vpop.f32.mrb[0].mxu0
    %282 = vmatprep.mubr.f32.mxu0 0.0
    %283 = vmatmul.mubr.f32.gmra.mrb[0].mxu0 %v66
    %v284 = vpop.f32.mrb[0].mxu0
    %v285 = vadd.f32 0.0, %v284
    %v286 = vpop.f32.mrb[0].mxu0
    %287 = vmatprep.mubr.f32.mxu0 0.0
    %288 = vmatmul.mubr.f32.gmra.mrb[0].mxu0 %v69
    %v289 = vpop.f32.mrb[0].mxu0
    %v290 = vadd.f32 0.0, %v289
    %v291 = vpop.f32.mrb[0].mxu0
    %292 = vmatprep.mubr.f32.mxu0 0.0
    %293 = vmatmul.mubr.f32.gmra.mrb[0].mxu0 %v72
    %v294 = vpop.f32.mrb[0].mxu0
    %v295 = vadd.f32 0.0, %v294
    %v296 = vpop.f32.mrb[0].mxu0
    %297 = vmatprep.mubr.f32.mxu0 0.0
    %298 = vmatmul.mubr.f32.gmra.mrb[0].mxu0 %v75
    %v299 = vpop.f32.mrb[0].mxu0
    %v300 = vadd.f32 0.0, %v299
    %v301 = vpop.f32.mrb[0].mxu0
    %302 = vdwg.mxu0
    %303 = vst [vmem:[#allocation3] sm:$0xff] %v265
    %304 = vst [vmem:[#allocation3 + $0x8] sm:$0xff] %v270
    %305 = vst [vmem:[#allocation3 + $0x10] sm:$0xff] %v275
    %306 = vst [vmem:[#allocation3 + $0x18] sm:$0xff] %v280
    %307 = vst [vmem:[#allocation3 + $0x20] sm:$0xff] %v285
    %308 = vst [vmem:[#allocation3 + $0x28] sm:$0xff] %v290
    %309 = vst [vmem:[#allocation3 + $0x30] sm:$0xff] %v295
    %310 = vst [vmem:[#allocation3 + $0x38] sm:$0xff] %v300
    %v311 = vld [vmem:[#allocation5] sm:$0xff]
    %v312 = vld [vmem:[#allocation2] sm:$0xff]
    %v313 = vmul.f32 %v312, %v312
    %314 = vadd.xlane.f32.xlu0 %v313
    %v315 = vpop.xlane.xlu0 %314
    %v316 = vrsqrt.pop %v315
    %v317 = vmul.f32 %v315, %v316
    %vm318 = vcmp.eq.f32.partialorder %v315, inf
    %v319 = vsel %vm318, %v315, %v317
    %vm320 = vcmp.eq.f32.partialorder %v315, 0.0
    %v321 = vand.u32 %v315, 2147483648
    %v322 = vsel %vm320, %v321, %v319
    %v323 = vmul.f32 %v311, %v311
    %324 = vadd.xlane.f32.xlu0 %v323
    %v325 = vpop.xlane.xlu0 %324
    %v326 = vrsqrt.pop %v325
    %v327 = vmul.f32 %v325, %v326
    %vm328 = vcmp.eq.f32.partialorder %v325, inf
    %v329 = vsel %vm328, %v325, %v327
    %vm330 = vcmp.eq.f32.partialorder %v325, 0.0
    %v331 = vand.u32 %v325, 2147483648
    %v332 = vsel %vm330, %v331, %v329
    %v333 = vadd.f32 %v322, %v332
    %v334 = vrcp.pop %v333
    %v335 = vmul.f32 %v322, %v334
    %v336 = vmul.f32 %v335, 0.2
    %v337 = vmax.f32 %v336, 0.0
    %v338 = vmin.f32 %v337, 1.0
    %v339 = vsub.f32 1.0, %v338
    %v340 = vmul.f32 %v339, %v311
    %v341 = vmul.f32 %v338, %v312
    %v342 = vadd.f32 %v340, %v341
    %s343 = smul.u32 0, 8
    %p344 = scmp.lt.s32.totalorder %s343, 8
    %s345 = scalar_select %p344, 1, 0
    %v346 = vstv %s345
    %vm347 = vcmp.eq.s32.totalorder %v346, 1
    %v348 = vsel %vm347, %v342, %v311
    %349 = vst [vmem:[#allocation4] sm:$0xff] %v348
    %s350 = scalar_lea.vmem [#allocation2], 8
    %v351 = vld [vmem:[%s350] sm:$0xff]
    %v352 = vmul.f32 %v351, %v351
    %353 = vadd.xlane.f32.xlu0 %v352
    %v354 = vpop.xlane.xlu0 %353
    %v355 = vrsqrt.pop %v354
    %v356 = vmul.f32 %v354, %v355
    %vm357 = vcmp.eq.f32.partialorder %v354, inf
    %v358 = vsel %vm357, %v354, %v356
    %vm359 = vcmp.eq.f32.partialorder %v354, 0.0
    %v360 = vand.u32 %v354, 2147483648
    %v361 = vsel %vm359, %v360, %v358
    %v362 = vmul.f32 %v348, %v348
    %363 = vadd.xlane.f32.xlu0 %v362
    %v364 = vpop.xlane.xlu0 %363
    %v365 = vrsqrt.pop %v364
    %v366 = vmul.f32 %v364, %v365
    %vm367 = vcmp.eq.f32.partialorder %v364, inf
    %v368 = vsel %vm367, %v364, %v366
    %vm369 = vcmp.eq.f32.partialorder %v364, 0.0
    %v370 = vand.u32 %v364, 2147483648
    %v371 = vsel %vm369, %v370, %v368
    %v372 = vadd.f32 %v361, %v371
    %v373 = vrcp.pop %v372
    %v374 = vmul.f32 %v361, %v373
    %v375 = vmul.f32 %v374, 0.2
    %v376 = vmax.f32 %v375, 0.0
    %v377 = vmin.f32 %v376, 1.0
    %v378 = vsub.f32 1.0, %v377
    %v379 = vmul.f32 %v378, %v348
    %v380 = vmul.f32 %v377, %v351
    %v381 = vadd.f32 %v379, %v380
    %s382 = sadd.s32 %s343, 1
    %p383 = scmp.lt.s32.totalorder %s382, 8
    %s384 = scalar_select %p383, 1, 0
    %v385 = vstv %s384
    %vm386 = vcmp.eq.s32.totalorder %v385, 1
    %v387 = vsel %vm386, %v381, %v348
    %s388 = scalar_lea.vmem [#allocation4], 8
    %389 = vst [vmem:[%s388] sm:$0xff] %v387
    %s390 = scalar_lea.vmem [#allocation2], 16
    %v391 = vld [vmem:[%s390] sm:$0xff]
    %v392 = vmul.f32 %v391, %v391
    %393 = vadd.xlane.f32.xlu0 %v392
    %v394 = vpop.xlane.xlu0 %393
    %v395 = vrsqrt.pop %v394
    %v396 = vmul.f32 %v394, %v395
    %vm397 = vcmp.eq.f32.partialorder %v394, inf
    %v398 = vsel %vm397, %v394, %v396
    %vm399 = vcmp.eq.f32.partialorder %v394, 0.0
    %v400 = vand.u32 %v394, 2147483648
    %v401 = vsel %vm399, %v400, %v398
    %v402 = vmul.f32 %v387, %v387
    %403 = vadd.xlane.f32.xlu0 %v402
    %v404 = vpop.xlane.xlu0 %403
    %v405 = vrsqrt.pop %v404
    %v406 = vmul.f32 %v404, %v405
    %vm407 = vcmp.eq.f32.partialorder %v404, inf
    %v408 = vsel %vm407, %v404, %v406
    %vm409 = vcmp.eq.f32.partialorder %v404, 0.0
    %v410 = vand.u32 %v404, 2147483648
    %v411 = vsel %vm409, %v410, %v408
    %v412 = vadd.f32 %v401, %v411
    %v413 = vrcp.pop %v412
    %v414 = vmul.f32 %v401, %v413
    %v415 = vmul.f32 %v414, 0.2
    %v416 = vmax.f32 %v415, 0.0
    %v417 = vmin.f32 %v416, 1.0
    %v418 = vsub.f32 1.0, %v417
    %v419 = vmul.f32 %v418, %v387
    %v420 = vmul.f32 %v417, %v391
    %v421 = vadd.f32 %v419, %v420
    %s422 = sadd.s32 %s343, 2
    %p423 = scmp.lt.s32.totalorder %s422, 8
    %s424 = scalar_select %p423, 1, 0
    %v425 = vstv %s424
    %vm426 = vcmp.eq.s32.totalorder %v425, 1
    %v427 = vsel %vm426, %v421, %v387
    %s428 = scalar_lea.vmem [#allocation4], 16
    %429 = vst [vmem:[%s428] sm:$0xff] %v427
    %s430 = scalar_lea.vmem [#allocation2], 24
    %v431 = vld [vmem:[%s430] sm:$0xff]
    %v432 = vmul.f32 %v431, %v431
    %433 = vadd.xlane.f32.xlu0 %v432
    %v434 = vpop.xlane.xlu0 %433
    %v435 = vrsqrt.pop %v434
    %v436 = vmul.f32 %v434, %v435
    %vm437 = vcmp.eq.f32.partialorder %v434, inf
    %v438 = vsel %vm437, %v434, %v436
    %vm439 = vcmp.eq.f32.partialorder %v434, 0.0
    %v440 = vand.u32 %v434, 2147483648
    %v441 = vsel %vm439, %v440, %v438
    %v442 = vmul.f32 %v427, %v427
    %443 = vadd.xlane.f32.xlu0 %v442
    %v444 = vpop.xlane.xlu0 %443
    %v445 = vrsqrt.pop %v444
    %v446 = vmul.f32 %v444, %v445
    %vm447 = vcmp.eq.f32.partialorder %v444, inf
    %v448 = vsel %vm447, %v444, %v446
    %vm449 = vcmp.eq.f32.partialorder %v444, 0.0
    %v450 = vand.u32 %v444, 2147483648
    %v451 = vsel %vm449, %v450, %v448
    %v452 = vadd.f32 %v441, %v451
    %v453 = vrcp.pop %v452
    %v454 = vmul.f32 %v441, %v453
    %v455 = vmul.f32 %v454, 0.2
    %v456 = vmax.f32 %v455, 0.0
    %v457 = vmin.f32 %v456, 1.0
    %v458 = vsub.f32 1.0, %v457
    %v459 = vmul.f32 %v458, %v427
    %v460 = vmul.f32 %v457, %v431
    %v461 = vadd.f32 %v459, %v460
    %s462 = sadd.s32 %s343, 3
    %p463 = scmp.lt.s32.totalorder %s462, 8
    %s464 = scalar_select %p463, 1, 0
    %v465 = vstv %s464
    %vm466 = vcmp.eq.s32.totalorder %v465, 1
    %v467 = vsel %vm466, %v461, %v427
    %s468 = scalar_lea.vmem [#allocation4], 24
    %469 = vst [vmem:[%s468] sm:$0xff] %v467
    %s470 = scalar_lea.vmem [#allocation2], 32
    %v471 = vld [vmem:[%s470] sm:$0xff]
    %v472 = vmul.f32 %v471, %v471
    %473 = vadd.xlane.f32.xlu0 %v472
    %v474 = vpop.xlane.xlu0 %473
    %v475 = vrsqrt.pop %v474
    %v476 = vmul.f32 %v474, %v475
    %vm477 = vcmp.eq.f32.partialorder %v474, inf
    %v478 = vsel %vm477, %v474, %v476
    %vm479 = vcmp.eq.f32.partialorder %v474, 0.0
    %v480 = vand.u32 %v474, 2147483648
    %v481 = vsel %vm479, %v480, %v478
    %v482 = vmul.f32 %v467, %v467
    %483 = vadd.xlane.f32.xlu0 %v482
    %v484 = vpop.xlane.xlu0 %483
    %v485 = vrsqrt.pop %v484
    %v486 = vmul.f32 %v484, %v485
    %vm487 = vcmp.eq.f32.partialorder %v484, inf
    %v488 = vsel %vm487, %v484, %v486
    %vm489 = vcmp.eq.f32.partialorder %v484, 0.0
    %v490 = vand.u32 %v484, 2147483648
    %v491 = vsel %vm489, %v490, %v488
    %v492 = vadd.f32 %v481, %v491
    %v493 = vrcp.pop %v492
    %v494 = vmul.f32 %v481, %v493
    %v495 = vmul.f32 %v494, 0.2
    %v496 = vmax.f32 %v495, 0.0
    %v497 = vmin.f32 %v496, 1.0
    %v498 = vsub.f32 1.0, %v497
    %v499 = vmul.f32 %v498, %v467
    %v500 = vmul.f32 %v497, %v471
    %v501 = vadd.f32 %v499, %v500
    %s502 = sadd.s32 %s343, 4
    %p503 = scmp.lt.s32.totalorder %s502, 8
    %s504 = scalar_select %p503, 1, 0
    %v505 = vstv %s504
    %vm506 = vcmp.eq.s32.totalorder %v505, 1
    %v507 = vsel %vm506, %v501, %v467
    %s508 = scalar_lea.vmem [#allocation4], 32
    %509 = vst [vmem:[%s508] sm:$0xff] %v507
    %s510 = scalar_lea.vmem [#allocation2], 40
    %v511 = vld [vmem:[%s510] sm:$0xff]
    %v512 = vmul.f32 %v511, %v511
    %513 = vadd.xlane.f32.xlu0 %v512
    %v514 = vpop.xlane.xlu0 %513
    %v515 = vrsqrt.pop %v514
    %v516 = vmul.f32 %v514, %v515
    %vm517 = vcmp.eq.f32.partialorder %v514, inf
    %v518 = vsel %vm517, %v514, %v516
    %vm519 = vcmp.eq.f32.partialorder %v514, 0.0
    %v520 = vand.u32 %v514, 2147483648
    %v521 = vsel %vm519, %v520, %v518
    %v522 = vmul.f32 %v507, %v507
    %523 = vadd.xlane.f32.xlu0 %v522
    %v524 = vpop.xlane.xlu0 %523
    %v525 = vrsqrt.pop %v524
    %v526 = vmul.f32 %v524, %v525
    %vm527 = vcmp.eq.f32.partialorder %v524, inf
    %v528 = vsel %vm527, %v524, %v526
    %vm529 = vcmp.eq.f32.partialorder %v524, 0.0
    %v530 = vand.u32 %v524, 2147483648
    %v531 = vsel %vm529, %v530, %v528
    %v532 = vadd.f32 %v521, %v531
    %v533 = vrcp.pop %v532
    %v534 = vmul.f32 %v521, %v533
    %v535 = vmul.f32 %v534, 0.2
    %v536 = vmax.f32 %v535, 0.0
    %v537 = vmin.f32 %v536, 1.0
    %v538 = vsub.f32 1.0, %v537
    %v539 = vmul.f32 %v538, %v507
    %v540 = vmul.f32 %v537, %v511
    %v541 = vadd.f32 %v539, %v540
    %s542 = sadd.s32 %s343, 5
    %p543 = scmp.lt.s32.totalorder %s542, 8
    %s544 = scalar_select %p543, 1, 0
    %v545 = vstv %s544
    %vm546 = vcmp.eq.s32.totalorder %v545, 1
    %v547 = vsel %vm546, %v541, %v507
    %s548 = scalar_lea.vmem [#allocation4], 40
    %549 = vst [vmem:[%s548] sm:$0xff] %v547
    %s550 = scalar_lea.vmem [#allocation2], 48
    %v551 = vld [vmem:[%s550] sm:$0xff]
    %v552 = vmul.f32 %v551, %v551
    %553 = vadd.xlane.f32.xlu0 %v552
    %v554 = vpop.xlane.xlu0 %553
    %v555 = vrsqrt.pop %v554
    %v556 = vmul.f32 %v554, %v555
    %vm557 = vcmp.eq.f32.partialorder %v554, inf
    %v558 = vsel %vm557, %v554, %v556
    %vm559 = vcmp.eq.f32.partialorder %v554, 0.0
    %v560 = vand.u32 %v554, 2147483648
    %v561 = vsel %vm559, %v560, %v558
    %v562 = vmul.f32 %v547, %v547
    %563 = vadd.xlane.f32.xlu0 %v562
    %v564 = vpop.xlane.xlu0 %563
    %v565 = vrsqrt.pop %v564
    %v566 = vmul.f32 %v564, %v565
    %vm567 = vcmp.eq.f32.partialorder %v564, inf
    %v568 = vsel %vm567, %v564, %v566
    %vm569 = vcmp.eq.f32.partialorder %v564, 0.0
    %v570 = vand.u32 %v564, 2147483648
    %v571 = vsel %vm569, %v570, %v568
    %v572 = vadd.f32 %v561, %v571
    %v573 = vrcp.pop %v572
    %v574 = vmul.f32 %v561, %v573
    %v575 = vmul.f32 %v574, 0.2
    %v576 = vmax.f32 %v575, 0.0
    %v577 = vmin.f32 %v576, 1.0
    %v578 = vsub.f32 1.0, %v577
    %v579 = vmul.f32 %v578, %v547
    %v580 = vmul.f32 %v577, %v551
    %v581 = vadd.f32 %v579, %v580
    %s582 = sadd.s32 %s343, 6
    %p583 = scmp.lt.s32.totalorder %s582, 8
    %s584 = scalar_select %p583, 1, 0
    %v585 = vstv %s584
    %vm586 = vcmp.eq.s32.totalorder %v585, 1
    %v587 = vsel %vm586, %v581, %v547
    %s588 = scalar_lea.vmem [#allocation4], 48
    %589 = vst [vmem:[%s588] sm:$0xff] %v587
    %s590 = scalar_lea.vmem [#allocation2], 56
    %v591 = vld [vmem:[%s590] sm:$0xff]
    %v592 = vmul.f32 %v591, %v591
    %593 = vadd.xlane.f32.xlu0 %v592
    %v594 = vpop.xlane.xlu0 %593
    %v595 = vrsqrt.pop %v594
    %v596 = vmul.f32 %v594, %v595
    %vm597 = vcmp.eq.f32.partialorder %v594, inf
    %v598 = vsel %vm597, %v594, %v596
    %vm599 = vcmp.eq.f32.partialorder %v594, 0.0
    %v600 = vand.u32 %v594, 2147483648
    %v601 = vsel %vm599, %v600, %v598
    %v602 = vmul.f32 %v587, %v587
    %603 = vadd.xlane.f32.xlu0 %v602
    %v604 = vpop.xlane.xlu0 %603
    %v605 = vrsqrt.pop %v604
    %v606 = vmul.f32 %v604, %v605
    %vm607 = vcmp.eq.f32.partialorder %v604, inf
    %v608 = vsel %vm607, %v604, %v606
    %vm609 = vcmp.eq.f32.partialorder %v604, 0.0
    %v610 = vand.u32 %v604, 2147483648
    %v611 = vsel %vm609, %v610, %v608
    %v612 = vadd.f32 %v601, %v611
    %v613 = vrcp.pop %v612
    %v614 = vmul.f32 %v601, %v613
    %v615 = vmul.f32 %v614, 0.2
    %v616 = vmax.f32 %v615, 0.0
    %v617 = vmin.f32 %v616, 1.0
    %v618 = vsub.f32 1.0, %v617
    %v619 = vmul.f32 %v618, %v587
    %v620 = vmul.f32 %v617, %v591
    %v621 = vadd.f32 %v619, %v620
    %s622 = sadd.s32 %s343, 7
    %p623 = scmp.lt.s32.totalorder %s622, 8
    %s624 = scalar_select %p623, 1, 0
    %v625 = vstv %s624
    %vm626 = vcmp.eq.s32.totalorder %v625, 1
    %v627 = vsel %vm626, %v621, %v587
    %s628 = scalar_lea.vmem [#allocation4], 56
    %629 = vst [vmem:[%s628] sm:$0xff] %v627
    %630 = vst [vmem:[#allocation5] sm:$0xff] %v627
    %v631 = vld [vmem:[#allocation4] sm:$0xff]
    %v632 = vld [vmem:[#allocation4 + $0x8] sm:$0xff]
    %v633 = vld [vmem:[#allocation4 + $0x10] sm:$0xff]
    %v634 = vld [vmem:[#allocation4 + $0x18] sm:$0xff]
    %v635 = vld [vmem:[#allocation4 + $0x20] sm:$0xff]
    %v636 = vld [vmem:[#allocation4 + $0x28] sm:$0xff]
    %v637 = vld [vmem:[#allocation4 + $0x30] sm:$0xff]
    %v638 = vld [vmem:[#allocation4 + $0x38] sm:$0xff]
    %v639 = vld [vmem:[#allocation3] sm:$0xff]
    %v640 = vld [vmem:[#allocation3 + $0x8] sm:$0xff]
    %v641 = vld [vmem:[#allocation3 + $0x10] sm:$0xff]
    %v642 = vld [vmem:[#allocation3 + $0x18] sm:$0xff]
    %v643 = vld [vmem:[#allocation3 + $0x20] sm:$0xff]
    %v644 = vld [vmem:[#allocation3 + $0x28] sm:$0xff]
    %v645 = vld [vmem:[#allocation3 + $0x30] sm:$0xff]
    %v646 = vld [vmem:[#allocation3 + $0x38] sm:$0xff]
    %v647 = vlaneseq
    %v648 = vand.u32 %v647, 127
    %v649 = vld [vmem:[#allocation6] sm:$0xff]
    %v650 = vld [vmem:[#allocation6 + $0x8] sm:$0xff]
    %v651 = vld [vmem:[#allocation6 + $0x10] sm:$0xff]
    %v652 = vld [vmem:[#allocation6 + $0x18] sm:$0xff]
    %v653 = vld [vmem:[#allocation6 + $0x20] sm:$0xff]
    %v654 = vld [vmem:[#allocation6 + $0x28] sm:$0xff]
    %v655 = vld [vmem:[#allocation6 + $0x30] sm:$0xff]
    %v656 = vld [vmem:[#allocation6 + $0x38] sm:$0xff]
    %v657 = vld [vmem:[#allocation6 + $0x40] sm:$0xff]
    %v658 = vld [vmem:[#allocation6 + $0x48] sm:$0xff]
    %v659 = vld [vmem:[#allocation6 + $0x50] sm:$0xff]
    %v660 = vld [vmem:[#allocation6 + $0x58] sm:$0xff]
    %v661 = vld [vmem:[#allocation6 + $0x60] sm:$0xff]
    %v662 = vld [vmem:[#allocation6 + $0x68] sm:$0xff]
    %v663 = vld [vmem:[#allocation6 + $0x70] sm:$0xff]
    %v664 = vld [vmem:[#allocation6 + $0x78] sm:$0xff]
    %665 = vmatprep.subr.mxu0 0.0
    %666 = vmatpush1.msra.mxu0 %v649
    %667 = vmatprep.subr.mxu0 0.0
    %668 = vmatpush1.msra.mxu0 %v650
    %669 = vmatprep.subr.mxu0 0.0
    %670 = vmatpush1.msra.mxu0 %v651
    %671 = vmatprep.subr.mxu0 0.0
    %672 = vmatpush1.msra.mxu0 %v652
    %673 = vmatprep.subr.mxu0 0.0
    %674 = vmatpush1.msra.mxu0 %v653
    %675 = vmatprep.subr.mxu0 0.0
    %676 = vmatpush1.msra.mxu0 %v654
    %677 = vmatprep.subr.mxu0 0.0
    %678 = vmatpush1.msra.mxu0 %v655
    %679 = vmatprep.subr.mxu0 0.0
    %680 = vmatpush1.msra.mxu0 %v656
    %681 = vmatprep.subr.mxu0 0.0
    %682 = vmatpush1.msra.mxu0 %v657
    %683 = vmatprep.subr.mxu0 0.0
    %684 = vmatpush1.msra.mxu0 %v658
    %685 = vmatprep.subr.mxu0 0.0
    %686 = vmatpush1.msra.mxu0 %v659
    %687 = vmatprep.subr.mxu0 0.0
    %688 = vmatpush1.msra.mxu0 %v660
    %689 = vmatprep.subr.mxu0 0.0
    %690 = vmatpush1.msra.mxu0 %v661
    %691 = vmatprep.subr.mxu0 0.0
    %692 = vmatpush1.msra.mxu0 %v662
    %693 = vmatprep.subr.mxu0 0.0
    %694 = vmatpush1.msra.mxu0 %v663
    %695 = vmatprep.subr.mxu0 0.0
    %696 = vmatpush1.msra.mxu0 %v664
    %697 = vmatprep.subr.mxu0 0.0
    %698 = vmatpush1.msra.mxu0 0.0
    %699 = vmatprep.subr.mxu0 0.0
    %700 = vmatpush1.msra.mxu0 0.0
    %701 = vmatprep.subr.mxu0 0.0
    %702 = vmatpush1.msra.mxu0 0.0
    %703 = vmatprep.subr.mxu0 0.0
    %704 = vmatpush1.msra.mxu0 0.0
    %705 = vmatprep.subr.mxu0 0.0
    %706 = vmatpush1.msra.mxu0 0.0
    %707 = vmatprep.subr.mxu0 0.0
    %708 = vmatpush1.msra.mxu0 0.0
    %709 = vmatprep.subr.mxu0 0.0
    %710 = vmatpush1.msra.mxu0 0.0
    %711 = vmatprep.subr.mxu0 0.0
    %712 = vmatpush1.msra.mxu0 0.0
    %713 = vmatprep.subr.mxu0 0.0
    %714 = vmatpush1.msra.mxu0 0.0
    %715 = vmatprep.subr.mxu0 0.0
    %716 = vmatpush1.msra.mxu0 0.0
    %717 = vmatprep.subr.mxu0 0.0
    %718 = vmatpush1.msra.mxu0 0.0
    %719 = vmatprep.subr.mxu0 0.0
    %720 = vmatpush1.msra.mxu0 0.0
    %721 = vmatprep.subr.mxu0 0.0
    %722 = vmatpush1.msra.mxu0 0.0
    %723 = vmatprep.subr.mxu0 0.0
    %724 = vmatpush1.msra.mxu0 0.0
    %725 = vmatprep.subr.mxu0 0.0
    %726 = vmatpush1.msra.mxu0 0.0
    %727 = vmatprep.subr.mxu0 0.0
    %728 = vmatpush1.msra.mxu0 0.0
    %729 = vmatprep.mubr.f32.mxu0 0.0
    %730 = vmatmul.mubr.f32.gmra.mrb[0].mxu0 %v631
    %v731 = vpop.f32.mrb[0].mxu0
    %v732 = vadd.f32 0.0, %v731
    %v733 = vpop.f32.mrb[0].mxu0
    %734 = vmatprep.mubr.f32.mxu0 0.0
    %735 = vmatmul.mubr.f32.gmra.mrb[0].mxu0 %v632
    %v736 = vpop.f32.mrb[0].mxu0
    %v737 = vadd.f32 0.0, %v736
    %v738 = vpop.f32.mrb[0].mxu0
    %739 = vmatprep.mubr.f32.mxu0 0.0
    %740 = vmatmul.mubr.f32.gmra.mrb[0].mxu0 %v633
    %v741 = vpop.f32.mrb[0].mxu0
    %v742 = vadd.f32 0.0, %v741
    %v743 = vpop.f32.mrb[0].mxu0
    %744 = vmatprep.mubr.f32.mxu0 0.0
    %745 = vmatmul.mubr.f32.gmra.mrb[0].mxu0 %v634
    %v746 = vpop.f32.mrb[0].mxu0
    %v747 = vadd.f32 0.0, %v746
    %v748 = vpop.f32.mrb[0].mxu0
    %749 = vmatprep.mubr.f32.mxu0 0.0
    %750 = vmatmul.mubr.f32.gmra.mrb[0].mxu0 %v635
    %v751 = vpop.f32.mrb[0].mxu0
    %v752 = vadd.f32 0.0, %v751
    %v753 = vpop.f32.mrb[0].mxu0
    %754 = vmatprep.mubr.f32.mxu0 0.0
    %755 = vmatmul.mubr.f32.gmra.mrb[0].mxu0 %v636
    %v756 = vpop.f32.mrb[0].mxu0
    %v757 = vadd.f32 0.0, %v756
    %v758 = vpop.f32.mrb[0].mxu0
    %759 = vmatprep.mubr.f32.mxu0 0.0
    %760 = vmatmul.mubr.f32.gmra.mrb[0].mxu0 %v637
    %v761 = vpop.f32.mrb[0].mxu0
    %v762 = vadd.f32 0.0, %v761
    %v763 = vpop.f32.mrb[0].mxu0
    %764 = vmatprep.mubr.f32.mxu0 0.0
    %765 = vmatmul.mubr.f32.gmra.mrb[0].mxu0 %v638
    %v766 = vpop.f32.mrb[0].mxu0
    %v767 = vadd.f32 0.0, %v766
    %v768 = vpop.f32.mrb[0].mxu0
    %769 = vdwg.mxu0
    %v770 = vmul.f32 %v732, %v639
    %v771 = vmul.f32 %v737, %v640
    %v772 = vmul.f32 %v742, %v641
    %v773 = vmul.f32 %v747, %v642
    %v774 = vmul.f32 %v752, %v643
    %v775 = vmul.f32 %v757, %v644
    %v776 = vmul.f32 %v762, %v645
    %v777 = vmul.f32 %v767, %v646
    %778 = vadd.xlane.f32.xlu0 %v770
    %v779 = vpop.xlane.xlu0 %778
    %780 = vadd.xlane.f32.xlu0 %v771
    %v781 = vpop.xlane.xlu0 %780
    %782 = vadd.xlane.f32.xlu0 %v772
    %v783 = vpop.xlane.xlu0 %782
    %784 = vadd.xlane.f32.xlu0 %v773
    %v785 = vpop.xlane.xlu0 %784
    %786 = vadd.xlane.f32.xlu0 %v774
    %v787 = vpop.xlane.xlu0 %786
    %788 = vadd.xlane.f32.xlu0 %v775
    %v789 = vpop.xlane.xlu0 %788
    %790 = vadd.xlane.f32.xlu0 %v776
    %v791 = vpop.xlane.xlu0 %790
    %792 = vadd.xlane.f32.xlu0 %v777
    %v793 = vpop.xlane.xlu0 %792
    %vm794 = vcmp.eq.s32.totalorder %v648, 0
    %v795 = vsel %vm794, %v779, 0.0
    %v796 = vsel %vm794, %v781, 0.0
    %v797 = vsel %vm794, %v783, 0.0
    %v798 = vsel %vm794, %v785, 0.0
    %v799 = vsel %vm794, %v787, 0.0
    %v800 = vsel %vm794, %v789, 0.0
    %v801 = vsel %vm794, %v791, 0.0
    %v802 = vsel %vm794, %v793, 0.0
    %v803 = vadd.f32 %v795, 0.0
    %v804 = vadd.f32 %v796, 0.0
    %v805 = vadd.f32 %v797, 0.0
    %v806 = vadd.f32 %v798, 0.0
    %v807 = vadd.f32 %v799, 0.0
    %v808 = vadd.f32 %v800, 0.0
    %v809 = vadd.f32 %v801, 0.0
    %v810 = vadd.f32 %v802, 0.0
    %s811 = scalar_lea.vmem [#allocation6], 128
    %v812 = vld [vmem:[%s811] sm:$0xff]
    %v813 = vld [vmem:[%s811 + $0x8] sm:$0xff]
    %v814 = vld [vmem:[%s811 + $0x10] sm:$0xff]
    %v815 = vld [vmem:[%s811 + $0x18] sm:$0xff]
    %v816 = vld [vmem:[%s811 + $0x20] sm:$0xff]
    %v817 = vld [vmem:[%s811 + $0x28] sm:$0xff]
    %v818 = vld [vmem:[%s811 + $0x30] sm:$0xff]
    %v819 = vld [vmem:[%s811 + $0x38] sm:$0xff]
    %v820 = vld [vmem:[%s811 + $0x40] sm:$0xff]
    %v821 = vld [vmem:[%s811 + $0x48] sm:$0xff]
    %v822 = vld [vmem:[%s811 + $0x50] sm:$0xff]
    %v823 = vld [vmem:[%s811 + $0x58] sm:$0xff]
    %v824 = vld [vmem:[%s811 + $0x60] sm:$0xff]
    %v825 = vld [vmem:[%s811 + $0x68] sm:$0xff]
    %v826 = vld [vmem:[%s811 + $0x70] sm:$0xff]
    %v827 = vld [vmem:[%s811 + $0x78] sm:$0xff]
    %828 = vmatprep.subr.mxu0 0.0
    %829 = vmatpush1.msra.mxu0 %v812
    %830 = vmatprep.subr.mxu0 0.0
    %831 = vmatpush1.msra.mxu0 %v813
    %832 = vmatprep.subr.mxu0 0.0
    %833 = vmatpush1.msra.mxu0 %v814
    %834 = vmatprep.subr.mxu0 0.0
    %835 = vmatpush1.msra.mxu0 %v815
    %836 = vmatprep.subr.mxu0 0.0
    %837 = vmatpush1.msra.mxu0 %v816
    %838 = vmatprep.subr.mxu0 0.0
    %839 = vmatpush1.msra.mxu0 %v817
    %840 = vmatprep.subr.mxu0 0.0
    %841 = vmatpush1.msra.mxu0 %v818
    %842 = vmatprep.subr.mxu0 0.0
    %843 = vmatpush1.msra.mxu0 %v819
    %844 = vmatprep.subr.mxu0 0.0
    %845 = vmatpush1.msra.mxu0 %v820
    %846 = vmatprep.subr.mxu0 0.0
    %847 = vmatpush1.msra.mxu0 %v821
    %848 = vmatprep.subr.mxu0 0.0
    %849 = vmatpush1.msra.mxu0 %v822
    %850 = vmatprep.subr.mxu0 0.0
    %851 = vmatpush1.msra.mxu0 %v823
    %852 = vmatprep.subr.mxu0 0.0
    %853 = vmatpush1.msra.mxu0 %v824
    %854 = vmatprep.subr.mxu0 0.0
    %855 = vmatpush1.msra.mxu0 %v825
    %856 = vmatprep.subr.mxu0 0.0
    %857 = vmatpush1.msra.mxu0 %v826
    %858 = vmatprep.subr.mxu0 0.0
    %859 = vmatpush1.msra.mxu0 %v827
    %860 = vmatprep.subr.mxu0 0.0
    %861 = vmatpush1.msra.mxu0 0.0
    %862 = vmatprep.subr.mxu0 0.0
    %863 = vmatpush1.msra.mxu0 0.0
    %864 = vmatprep.subr.mxu0 0.0
    %865 = vmatpush1.msra.mxu0 0.0
    %866 = vmatprep.subr.mxu0 0.0
    %867 = vmatpush1.msra.mxu0 0.0
    %868 = vmatprep.subr.mxu0 0.0
    %869 = vmatpush1.msra.mxu0 0.0
    %870 = vmatprep.subr.mxu0 0.0
    %871 = vmatpush1.msra.mxu0 0.0
    %872 = vmatprep.subr.mxu0 0.0
    %873 = vmatpush1.msra.mxu0 0.0
    %874 = vmatprep.subr.mxu0 0.0
    %875 = vmatpush1.msra.mxu0 0.0
    %876 = vmatprep.subr.mxu0 0.0
    %877 = vmatpush1.msra.mxu0 0.0
    %878 = vmatprep.subr.mxu0 0.0
    %879 = vmatpush1.msra.mxu0 0.0
    %880 = vmatprep.subr.mxu0 0.0
    %881 = vmatpush1.msra.mxu0 0.0
    %882 = vmatprep.subr.mxu0 0.0
    %883 = vmatpush1.msra.mxu0 0.0
    %884 = vmatprep.subr.mxu0 0.0
    %885 = vmatpush1.msra.mxu0 0.0
    %886 = vmatprep.subr.mxu0 0.0
    %887 = vmatpush1.msra.mxu0 0.0
    %888 = vmatprep.subr.mxu0 0.0
    %889 = vmatpush1.msra.mxu0 0.0
    %890 = vmatprep.subr.mxu0 0.0
    %891 = vmatpush1.msra.mxu0 0.0
    %892 = vmatprep.mubr.f32.mxu0 0.0
    %893 = vmatmul.mubr.f32.gmra.mrb[0].mxu0 %v631
    %v894 = vpop.f32.mrb[0].mxu0
    %v895 = vadd.f32 0.0, %v894
    %v896 = vpop.f32.mrb[0].mxu0
    %897 = vmatprep.mubr.f32.mxu0 0.0
    %898 = vmatmul.mubr.f32.gmra.mrb[0].mxu0 %v632
    %v899 = vpop.f32.mrb[0].mxu0
    %v900 = vadd.f32 0.0, %v899
    %v901 = vpop.f32.mrb[0].mxu0
    %902 = vmatprep.mubr.f32.mxu0 0.0
    %903 = vmatmul.mubr.f32.gmra.mrb[0].mxu0 %v633
    %v904 = vpop.f32.mrb[0].mxu0
    %v905 = vadd.f32 0.0, %v904
    %v906 = vpop.f32.mrb[0].mxu0
    %907 = vmatprep.mubr.f32.mxu0 0.0
    %908 = vmatmul.mubr.f32.gmra.mrb[0].mxu0 %v634
    %v909 = vpop.f32.mrb[0].mxu0
    %v910 = vadd.f32 0.0, %v909
    %v911 = vpop.f32.mrb[0].mxu0
    %912 = vmatprep.mubr.f32.mxu0 0.0
    %913 = vmatmul.mubr.f32.gmra.mrb[0].mxu0 %v635
    %v914 = vpop.f32.mrb[0].mxu0
    %v915 = vadd.f32 0.0, %v914
    %v916 = vpop.f32.mrb[0].mxu0
    %917 = vmatprep.mubr.f32.mxu0 0.0
    %918 = vmatmul.mubr.f32.gmra.mrb[0].mxu0 %v636
    %v919 = vpop.f32.mrb[0].mxu0
    %v920 = vadd.f32 0.0, %v919
    %v921 = vpop.f32.mrb[0].mxu0
    %922 = vmatprep.mubr.f32.mxu0 0.0
    %923 = vmatmul.mubr.f32.gmra.mrb[0].mxu0 %v637
    %v924 = vpop.f32.mrb[0].mxu0
    %v925 = vadd.f32 0.0, %v924
    %v926 = vpop.f32.mrb[0].mxu0
    %927 = vmatprep.mubr.f32.mxu0 0.0
    %928 = vmatmul.mubr.f32.gmra.mrb[0].mxu0 %v638
    %v929 = vpop.f32.mrb[0].mxu0
    %v930 = vadd.f32 0.0, %v929
    %v931 = vpop.f32.mrb[0].mxu0
    %932 = vdwg.mxu0
    %v933 = vmul.f32 %v895, %v639
    %v934 = vmul.f32 %v900, %v640
    %v935 = vmul.f32 %v905, %v641
    %v936 = vmul.f32 %v910, %v642
    %v937 = vmul.f32 %v915, %v643
    %v938 = vmul.f32 %v920, %v644
    %v939 = vmul.f32 %v925, %v645
    %v940 = vmul.f32 %v930, %v646
    %941 = vadd.xlane.f32.xlu0 %v933
    %v942 = vpop.xlane.xlu0 %941
    %943 = vadd.xlane.f32.xlu0 %v934
    %v944 = vpop.xlane.xlu0 %943
    %945 = vadd.xlane.f32.xlu0 %v935
    %v946 = vpop.xlane.xlu0 %945
    %947 = vadd.xlane.f32.xlu0 %v936
    %v948 = vpop.xlane.xlu0 %947
    %949 = vadd.xlane.f32.xlu0 %v937
    %v950 = vpop.xlane.xlu0 %949
    %951 = vadd.xlane.f32.xlu0 %v938
    %v952 = vpop.xlane.xlu0 %951
    %953 = vadd.xlane.f32.xlu0 %v939
    %v954 = vpop.xlane.xlu0 %953
    %955 = vadd.xlane.f32.xlu0 %v940
    %v956 = vpop.xlane.xlu0 %955
    %vm957 = vcmp.eq.s32.totalorder %v648, 1
    %v958 = vsel %vm957, %v942, 0.0
    %v959 = vsel %vm957, %v944, 0.0
    %v960 = vsel %vm957, %v946, 0.0
    %v961 = vsel %vm957, %v948, 0.0
    %v962 = vsel %vm957, %v950, 0.0
    %v963 = vsel %vm957, %v952, 0.0
    %v964 = vsel %vm957, %v954, 0.0
    %v965 = vsel %vm957, %v956, 0.0
    %v966 = vadd.f32 %v803, %v958
    %v967 = vadd.f32 %v804, %v959
    %v968 = vadd.f32 %v805, %v960
    %v969 = vadd.f32 %v806, %v961
    %v970 = vadd.f32 %v807, %v962
    %v971 = vadd.f32 %v808, %v963
    %v972 = vadd.f32 %v809, %v964
    %v973 = vadd.f32 %v810, %v965
    %s974 = scalar_lea.vmem [#allocation6], 256
    %v975 = vld [vmem:[%s974] sm:$0xff]
    %v976 = vld [vmem:[%s974 + $0x8] sm:$0xff]
    %v977 = vld [vmem:[%s974 + $0x10] sm:$0xff]
    %v978 = vld [vmem:[%s974 + $0x18] sm:$0xff]
    %v979 = vld [vmem:[%s974 + $0x20] sm:$0xff]
    %v980 = vld [vmem:[%s974 + $0x28] sm:$0xff]
    %v981 = vld [vmem:[%s974 + $0x30] sm:$0xff]
    %v982 = vld [vmem:[%s974 + $0x38] sm:$0xff]
    %v983 = vld [vmem:[%s974 + $0x40] sm:$0xff]
    %v984 = vld [vmem:[%s974 + $0x48] sm:$0xff]
    %v985 = vld [vmem:[%s974 + $0x50] sm:$0xff]
    %v986 = vld [vmem:[%s974 + $0x58] sm:$0xff]
    %v987 = vld [vmem:[%s974 + $0x60] sm:$0xff]
    %v988 = vld [vmem:[%s974 + $0x68] sm:$0xff]
    %v989 = vld [vmem:[%s974 + $0x70] sm:$0xff]
    %v990 = vld [vmem:[%s974 + $0x78] sm:$0xff]
    %991 = vmatprep.subr.mxu0 0.0
    %992 = vmatpush1.msra.mxu0 %v975
    %993 = vmatprep.subr.mxu0 0.0
    %994 = vmatpush1.msra.mxu0 %v976
    %995 = vmatprep.subr.mxu0 0.0
    %996 = vmatpush1.msra.mxu0 %v977
    %997 = vmatprep.subr.mxu0 0.0
    %998 = vmatpush1.msra.mxu0 %v978
    %999 = vmatprep.subr.mxu0 0.0
    %1000 = vmatpush1.msra.mxu0 %v979
    %1001 = vmatprep.subr.mxu0 0.0
    %1002 = vmatpush1.msra.mxu0 %v980
    %1003 = vmatprep.subr.mxu0 0.0
    %1004 = vmatpush1.msra.mxu0 %v981
    %1005 = vmatprep.subr.mxu0 0.0
    %1006 = vmatpush1.msra.mxu0 %v982
    %1007 = vmatprep.subr.mxu0 0.0
    %1008 = vmatpush1.msra.mxu0 %v983
    %1009 = vmatprep.subr.mxu0 0.0
    %1010 = vmatpush1.msra.mxu0 %v984
    %1011 = vmatprep.subr.mxu0 0.0
    %1012 = vmatpush1.msra.mxu0 %v985
    %1013 = vmatprep.subr.mxu0 0.0
    %1014 = vmatpush1.msra.mxu0 %v986
    %1015 = vmatprep.subr.mxu0 0.0
    %1016 = vmatpush1.msra.mxu0 %v987
    %1017 = vmatprep.subr.mxu0 0.0
    %1018 = vmatpush1.msra.mxu0 %v988
    %1019 = vmatprep.subr.mxu0 0.0
    %1020 = vmatpush1.msra.mxu0 %v989
    %1021 = vmatprep.subr.mxu0 0.0
    %1022 = vmatpush1.msra.mxu0 %v990
    %1023 = vmatprep.subr.mxu0 0.0
    %1024 = vmatpush1.msra.mxu0 0.0
    %1025 = vmatprep.subr.mxu0 0.0
    %1026 = vmatpush1.msra.mxu0 0.0
    %1027 = vmatprep.subr.mxu0 0.0
    %1028 = vmatpush1.msra.mxu0 0.0
    %1029 = vmatprep.subr.mxu0 0.0
    %1030 = vmatpush1.msra.mxu0 0.0
    %1031 = vmatprep.subr.mxu0 0.0
    %1032 = vmatpush1.msra.mxu0 0.0
    %1033 = vmatprep.subr.mxu0 0.0
    %1034 = vmatpush1.msra.mxu0 0.0
    %1035 = vmatprep.subr.mxu0 0.0
    %1036 = vmatpush1.msra.mxu0 0.0
    %1037 = vmatprep.subr.mxu0 0.0
    %1038 = vmatpush1.msra.mxu0 0.0
    %1039 = vmatprep.subr.mxu0 0.0
    %1040 = vmatpush1.msra.mxu0 0.0
    %1041 = vmatprep.subr.mxu0 0.0
    %1042 = vmatpush1.msra.mxu0 0.0
    %1043 = vmatprep.subr.mxu0 0.0
    %1044 = vmatpush1.msra.mxu0 0.0
    %1045 = vmatprep.subr.mxu0 0.0
    %1046 = vmatpush1.msra.mxu0 0.0
    %1047 = vmatprep.subr.mxu0 0.0
    %1048 = vmatpush1.msra.mxu0 0.0
    %1049 = vmatprep.subr.mxu0 0.0
    %1050 = vmatpush1.msra.mxu0 0.0
    %1051 = vmatprep.subr.mxu0 0.0
    %1052 = vmatpush1.msra.mxu0 0.0
    %1053 = vmatprep.subr.mxu0 0.0
    %1054 = vmatpush1.msra.mxu0 0.0
    %1055 = vmatprep.mubr.f32.mxu0 0.0
    %1056 = vmatmul.mubr.f32.gmra.mrb[0].mxu0 %v631
    %v1057 = vpop.f32.mrb[0].mxu0
    %v1058 = vadd.f32 0.0, %v1057
    %v1059 = vpop.f32.mrb[0].mxu0
    %1060 = vmatprep.mubr.f32.mxu0 0.0
    %1061 = vmatmul.mubr.f32.gmra.mrb[0].mxu0 %v632
    %v1062 = vpop.f32.mrb[0].mxu0
    %v1063 = vadd.f32 0.0, %v1062
    %v1064 = vpop.f32.mrb[0].mxu0
    %1065 = vmatprep.mubr.f32.mxu0 0.0
    %1066 = vmatmul.mubr.f32.gmra.mrb[0].mxu0 %v633
    %v1067 = vpop.f32.mrb[0].mxu0
    %v1068 = vadd.f32 0.0, %v1067
    %v1069 = vpop.f32.mrb[0].mxu0
    %1070 = vmatprep.mubr.f32.mxu0 0.0
    %1071 = vmatmul.mubr.f32.gmra.mrb[0].mxu0 %v634
    %v1072 = vpop.f32.mrb[0].mxu0
    %v1073 = vadd.f32 0.0, %v1072
    %v1074 = vpop.f32.mrb[0].mxu0
    %1075 = vmatprep.mubr.f32.mxu0 0.0
    %1076 = vmatmul.mubr.f32.gmra.mrb[0].mxu0 %v635
    %v1077 = vpop.f32.mrb[0].mxu0
    %v1078 = vadd.f32 0.0, %v1077
    %v1079 = vpop.f32.mrb[0].mxu0
    %1080 = vmatprep.mubr.f32.mxu0 0.0
    %1081 = vmatmul.mubr.f32.gmra.mrb[0].mxu0 %v636
    %v1082 = vpop.f32.mrb[0].mxu0
    %v1083 = vadd.f32 0.0, %v1082
    %v1084 = vpop.f32.mrb[0].mxu0
    %1085 = vmatprep.mubr.f32.mxu0 0.0
    %1086 = vmatmul.mubr.f32.gmra.mrb[0].mxu0 %v637
    %v1087 = vpop.f32.mrb[0].mxu0
    %v1088 = vadd.f32 0.0, %v1087
    %v1089 = vpop.f32.mrb[0].mxu0
    %1090 = vmatprep.mubr.f32.mxu0 0.0
    %1091 = vmatmul.mubr.f32.gmra.mrb[0].mxu0 %v638
    %v1092 = vpop.f32.mrb[0].mxu0
    %v1093 = vadd.f32 0.0, %v1092
    %v1094 = vpop.f32.mrb[0].mxu0
    %1095 = vdwg.mxu0
    %v1096 = vmul.f32 %v1058, %v639
    %v1097 = vmul.f32 %v1063, %v640
    %v1098 = vmul.f32 %v1068, %v641
    %v1099 = vmul.f32 %v1073, %v642
    %v1100 = vmul.f32 %v1078, %v643
    %v1101 = vmul.f32 %v1083, %v644
    %v1102 = vmul.f32 %v1088, %v645
    %v1103 = vmul.f32 %v1093, %v646
    %1104 = vadd.xlane.f32.xlu0 %v1096
    %v1105 = vpop.xlane.xlu0 %1104
    %1106 = vadd.xlane.f32.xlu0 %v1097
    %v1107 = vpop.xlane.xlu0 %1106
    %1108 = vadd.xlane.f32.xlu0 %v1098
    %v1109 = vpop.xlane.xlu0 %1108
    %1110 = vadd.xlane.f32.xlu0 %v1099
    %v1111 = vpop.xlane.xlu0 %1110
    %1112 = vadd.xlane.f32.xlu0 %v1100
    %v1113 = vpop.xlane.xlu0 %1112
    %1114 = vadd.xlane.f32.xlu0 %v1101
    %v1115 = vpop.xlane.xlu0 %1114
    %1116 = vadd.xlane.f32.xlu0 %v1102
    %v1117 = vpop.xlane.xlu0 %1116
    %1118 = vadd.xlane.f32.xlu0 %v1103
    %v1119 = vpop.xlane.xlu0 %1118
    %vm1120 = vcmp.eq.s32.totalorder %v648, 2
    %v1121 = vsel %vm1120, %v1105, 0.0
    %v1122 = vsel %vm1120, %v1107, 0.0
    %v1123 = vsel %vm1120, %v1109, 0.0
    %v1124 = vsel %vm1120, %v1111, 0.0
    %v1125 = vsel %vm1120, %v1113, 0.0
    %v1126 = vsel %vm1120, %v1115, 0.0
    %v1127 = vsel %vm1120, %v1117, 0.0
    %v1128 = vsel %vm1120, %v1119, 0.0
    %v1129 = vadd.f32 %v966, %v1121
    %v1130 = vadd.f32 %v967, %v1122
    %v1131 = vadd.f32 %v968, %v1123
    %v1132 = vadd.f32 %v969, %v1124
    %v1133 = vadd.f32 %v970, %v1125
    %v1134 = vadd.f32 %v971, %v1126
    %v1135 = vadd.f32 %v972, %v1127
    %v1136 = vadd.f32 %v973, %v1128
    %s1137 = scalar_lea.vmem [#allocation6], 384
    %v1138 = vld [vmem:[%s1137] sm:$0xff]
    %v1139 = vld [vmem:[%s1137 + $0x8] sm:$0xff]
    %v1140 = vld [vmem:[%s1137 + $0x10] sm:$0xff]
    %v1141 = vld [vmem:[%s1137 + $0x18] sm:$0xff]
    %v1142 = vld [vmem:[%s1137 + $0x20] sm:$0xff]
    %v1143 = vld [vmem:[%s1137 + $0x28] sm:$0xff]
    %v1144 = vld [vmem:[%s1137 + $0x30] sm:$0xff]
    %v1145 = vld [vmem:[%s1137 + $0x38] sm:$0xff]
    %v1146 = vld [vmem:[%s1137 + $0x40] sm:$0xff]
    %v1147 = vld [vmem:[%s1137 + $0x48] sm:$0xff]
    %v1148 = vld [vmem:[%s1137 + $0x50] sm:$0xff]
    %v1149 = vld [vmem:[%s1137 + $0x58] sm:$0xff]
    %v1150 = vld [vmem:[%s1137 + $0x60] sm:$0xff]
    %v1151 = vld [vmem:[%s1137 + $0x68] sm:$0xff]
    %v1152 = vld [vmem:[%s1137 + $0x70] sm:$0xff]
    %v1153 = vld [vmem:[%s1137 + $0x78] sm:$0xff]
    %1154 = vmatprep.subr.mxu0 0.0
    %1155 = vmatpush1.msra.mxu0 %v1138
    %1156 = vmatprep.subr.mxu0 0.0
    %1157 = vmatpush1.msra.mxu0 %v1139
    %1158 = vmatprep.subr.mxu0 0.0
    %1159 = vmatpush1.msra.mxu0 %v1140
    %1160 = vmatprep.subr.mxu0 0.0
    %1161 = vmatpush1.msra.mxu0 %v1141
    %1162 = vmatprep.subr.mxu0 0.0
    %1163 = vmatpush1.msra.mxu0 %v1142
    %1164 = vmatprep.subr.mxu0 0.0
    %1165 = vmatpush1.msra.mxu0 %v1143
    %1166 = vmatprep.subr.mxu0 0.0
    %1167 = vmatpush1.msra.mxu0 %v1144
    %1168 = vmatprep.subr.mxu0 0.0
    %1169 = vmatpush1.msra.mxu0 %v1145
    %1170 = vmatprep.subr.mxu0 0.0
    %1171 = vmatpush1.msra.mxu0 %v1146
    %1172 = vmatprep.subr.mxu0 0.0
    %1173 = vmatpush1.msra.mxu0 %v1147
    %1174 = vmatprep.subr.mxu0 0.0
    %1175 = vmatpush1.msra.mxu0 %v1148
    %1176 = vmatprep.subr.mxu0 0.0
    %1177 = vmatpush1.msra.mxu0 %v1149
    %1178 = vmatprep.subr.mxu0 0.0
    %1179 = vmatpush1.msra.mxu0 %v1150
    %1180 = vmatprep.subr.mxu0 0.0
    %1181 = vmatpush1.msra.mxu0 %v1151
    %1182 = vmatprep.subr.mxu0 0.0
    %1183 = vmatpush1.msra.mxu0 %v1152
    %1184 = vmatprep.subr.mxu0 0.0
    %1185 = vmatpush1.msra.mxu0 %v1153
    %1186 = vmatprep.subr.mxu0 0.0
    %1187 = vmatpush1.msra.mxu0 0.0
    %1188 = vmatprep.subr.mxu0 0.0
    %1189 = vmatpush1.msra.mxu0 0.0
    %1190 = vmatprep.subr.mxu0 0.0
    %1191 = vmatpush1.msra.mxu0 0.0
    %1192 = vmatprep.subr.mxu0 0.0
    %1193 = vmatpush1.msra.mxu0 0.0
    %1194 = vmatprep.subr.mxu0 0.0
    %1195 = vmatpush1.msra.mxu0 0.0
    %1196 = vmatprep.subr.mxu0 0.0
    %1197 = vmatpush1.msra.mxu0 0.0
    %1198 = vmatprep.subr.mxu0 0.0
    %1199 = vmatpush1.msra.mxu0 0.0
    %1200 = vmatprep.subr.mxu0 0.0
    %1201 = vmatpush1.msra.mxu0 0.0
    %1202 = vmatprep.subr.mxu0 0.0
    %1203 = vmatpush1.msra.mxu0 0.0
    %1204 = vmatprep.subr.mxu0 0.0
    %1205 = vmatpush1.msra.mxu0 0.0
    %1206 = vmatprep.subr.mxu0 0.0
    %1207 = vmatpush1.msra.mxu0 0.0
    %1208 = vmatprep.subr.mxu0 0.0
    %1209 = vmatpush1.msra.mxu0 0.0
    %1210 = vmatprep.subr.mxu0 0.0
    %1211 = vmatpush1.msra.mxu0 0.0
    %1212 = vmatprep.subr.mxu0 0.0
    %1213 = vmatpush1.msra.mxu0 0.0
    %1214 = vmatprep.subr.mxu0 0.0
    %1215 = vmatpush1.msra.mxu0 0.0
    %1216 = vmatprep.subr.mxu0 0.0
    %1217 = vmatpush1.msra.mxu0 0.0
    %1218 = vmatprep.mubr.f32.mxu0 0.0
    %1219 = vmatmul.mubr.f32.gmra.mrb[0].mxu0 %v631
    %v1220 = vpop.f32.mrb[0].mxu0
    %v1221 = vadd.f32 0.0, %v1220
    %v1222 = vpop.f32.mrb[0].mxu0
    %1223 = vmatprep.mubr.f32.mxu0 0.0
    %1224 = vmatmul.mubr.f32.gmra.mrb[0].mxu0 %v632
    %v1225 = vpop.f32.mrb[0].mxu0
    %v1226 = vadd.f32 0.0, %v1225
    %v1227 = vpop.f32.mrb[0].mxu0
    %1228 = vmatprep.mubr.f32.mxu0 0.0
    %1229 = vmatmul.mubr.f32.gmra.mrb[0].mxu0 %v633
    %v1230 = vpop.f32.mrb[0].mxu0
    %v1231 = vadd.f32 0.0, %v1230
    %v1232 = vpop.f32.mrb[0].mxu0
    %1233 = vmatprep.mubr.f32.mxu0 0.0
    %1234 = vmatmul.mubr.f32.gmra.mrb[0].mxu0 %v634
    %v1235 = vpop.f32.mrb[0].mxu0
    %v1236 = vadd.f32 0.0, %v1235
    %v1237 = vpop.f32.mrb[0].mxu0
    %1238 = vmatprep.mubr.f32.mxu0 0.0
    %1239 = vmatmul.mubr.f32.gmra.mrb[0].mxu0 %v635
    %v1240 = vpop.f32.mrb[0].mxu0
    %v1241 = vadd.f32 0.0, %v1240
    %v1242 = vpop.f32.mrb[0].mxu0
    %1243 = vmatprep.mubr.f32.mxu0 0.0
    %1244 = vmatmul.mubr.f32.gmra.mrb[0].mxu0 %v636
    %v1245 = vpop.f32.mrb[0].mxu0
    %v1246 = vadd.f32 0.0, %v1245
    %v1247 = vpop.f32.mrb[0].mxu0
    %1248 = vmatprep.mubr.f32.mxu0 0.0
    %1249 = vmatmul.mubr.f32.gmra.mrb[0].mxu0 %v637
    %v1250 = vpop.f32.mrb[0].mxu0
    %v1251 = vadd.f32 0.0, %v1250
    %v1252 = vpop.f32.mrb[0].mxu0
    %1253 = vmatprep.mubr.f32.mxu0 0.0
    %1254 = vmatmul.mubr.f32.gmra.mrb[0].mxu0 %v638
    %v1255 = vpop.f32.mrb[0].mxu0
    %v1256 = vadd.f32 0.0, %v1255
    %v1257 = vpop.f32.mrb[0].mxu0
    %1258 = vdwg.mxu0
    %v1259 = vmul.f32 %v1221, %v639
    %v1260 = vmul.f32 %v1226, %v640
    %v1261 = vmul.f32 %v1231, %v641
    %v1262 = vmul.f32 %v1236, %v642
    %v1263 = vmul.f32 %v1241, %v643
    %v1264 = vmul.f32 %v1246, %v644
    %v1265 = vmul.f32 %v1251, %v645
    %v1266 = vmul.f32 %v1256, %v646
    %1267 = vadd.xlane.f32.xlu0 %v1259
    %v1268 = vpop.xlane.xlu0 %1267
    %1269 = vadd.xlane.f32.xlu0 %v1260
    %v1270 = vpop.xlane.xlu0 %1269
    %1271 = vadd.xlane.f32.xlu0 %v1261
    %v1272 = vpop.xlane.xlu0 %1271
    %1273 = vadd.xlane.f32.xlu0 %v1262
    %v1274 = vpop.xlane.xlu0 %1273
    %1275 = vadd.xlane.f32.xlu0 %v1263
    %v1276 = vpop.xlane.xlu0 %1275
    %1277 = vadd.xlane.f32.xlu0 %v1264
    %v1278 = vpop.xlane.xlu0 %1277
    %1279 = vadd.xlane.f32.xlu0 %v1265
    %v1280 = vpop.xlane.xlu0 %1279
    %1281 = vadd.xlane.f32.xlu0 %v1266
    %v1282 = vpop.xlane.xlu0 %1281
    %vm1283 = vcmp.eq.s32.totalorder %v648, 3
    %v1284 = vsel %vm1283, %v1268, 0.0
    %v1285 = vsel %vm1283, %v1270, 0.0
    %v1286 = vsel %vm1283, %v1272, 0.0
    %v1287 = vsel %vm1283, %v1274, 0.0
    %v1288 = vsel %vm1283, %v1276, 0.0
    %v1289 = vsel %vm1283, %v1278, 0.0
    %v1290 = vsel %vm1283, %v1280, 0.0
    %v1291 = vsel %vm1283, %v1282, 0.0
    %v1292 = vadd.f32 %v1129, %v1284
    %v1293 = vadd.f32 %v1130, %v1285
    %v1294 = vadd.f32 %v1131, %v1286
    %v1295 = vadd.f32 %v1132, %v1287
    %v1296 = vadd.f32 %v1133, %v1288
    %v1297 = vadd.f32 %v1134, %v1289
    %v1298 = vadd.f32 %v1135, %v1290
    %v1299 = vadd.f32 %v1136, %v1291
    %s1300 = scalar_lea.vmem [#allocation6], 512
    %v1301 = vld [vmem:[%s1300] sm:$0xff]
    %v1302 = vld [vmem:[%s1300 + $0x8] sm:$0xff]
    %v1303 = vld [vmem:[%s1300 + $0x10] sm:$0xff]
    %v1304 = vld [vmem:[%s1300 + $0x18] sm:$0xff]
    %v1305 = vld [vmem:[%s1300 + $0x20] sm:$0xff]
    %v1306 = vld [vmem:[%s1300 + $0x28] sm:$0xff]
    %v1307 = vld [vmem:[%s1300 + $0x30] sm:$0xff]
    %v1308 = vld [vmem:[%s1300 + $0x38] sm:$0xff]
    %v1309 = vld [vmem:[%s1300 + $0x40] sm:$0xff]
    %v1310 = vld [vmem:[%s1300 + $0x48] sm:$0xff]
    %v1311 = vld [vmem:[%s1300 + $0x50] sm:$0xff]
    %v1312 = vld [vmem:[%s1300 + $0x58] sm:$0xff]
    %v1313 = vld [vmem:[%s1300 + $0x60] sm:$0xff]
    %v1314 = vld [vmem:[%s1300 + $0x68] sm:$0xff]
    %v1315 = vld [vmem:[%s1300 + $0x70] sm:$0xff]
    %v1316 = vld [vmem:[%s1300 + $0x78] sm:$0xff]
    %1317 = vmatprep.subr.mxu0 0.0
    %1318 = vmatpush1.msra.mxu0 %v1301
    %1319 = vmatprep.subr.mxu0 0.0
    %1320 = vmatpush1.msra.mxu0 %v1302
    %1321 = vmatprep.subr.mxu0 0.0
    %1322 = vmatpush1.msra.mxu0 %v1303
    %1323 = vmatprep.subr.mxu0 0.0
    %1324 = vmatpush1.msra.mxu0 %v1304
    %1325 = vmatprep.subr.mxu0 0.0
    %1326 = vmatpush1.msra.mxu0 %v1305
    %1327 = vmatprep.subr.mxu0 0.0
    %1328 = vmatpush1.msra.mxu0 %v1306
    %1329 = vmatprep.subr.mxu0 0.0
    %1330 = vmatpush1.msra.mxu0 %v1307
    %1331 = vmatprep.subr.mxu0 0.0
    %1332 = vmatpush1.msra.mxu0 %v1308
    %1333 = vmatprep.subr.mxu0 0.0
    %1334 = vmatpush1.msra.mxu0 %v1309
    %1335 = vmatprep.subr.mxu0 0.0
    %1336 = vmatpush1.msra.mxu0 %v1310
    %1337 = vmatprep.subr.mxu0 0.0
    %1338 = vmatpush1.msra.mxu0 %v1311
    %1339 = vmatprep.subr.mxu0 0.0
    %1340 = vmatpush1.msra.mxu0 %v1312
    %1341 = vmatprep.subr.mxu0 0.0
    %1342 = vmatpush1.msra.mxu0 %v1313
    %1343 = vmatprep.subr.mxu0 0.0
    %1344 = vmatpush1.msra.mxu0 %v1314
    %1345 = vmatprep.subr.mxu0 0.0
    %1346 = vmatpush1.msra.mxu0 %v1315
    %1347 = vmatprep.subr.mxu0 0.0
    %1348 = vmatpush1.msra.mxu0 %v1316
    %1349 = vmatprep.subr.mxu0 0.0
    %1350 = vmatpush1.msra.mxu0 0.0
    %1351 = vmatprep.subr.mxu0 0.0
    %1352 = vmatpush1.msra.mxu0 0.0
    %1353 = vmatprep.subr.mxu0 0.0
    %1354 = vmatpush1.msra.mxu0 0.0
    %1355 = vmatprep.subr.mxu0 0.0
    %1356 = vmatpush1.msra.mxu0 0.0
    %1357 = vmatprep.subr.mxu0 0.0
    %1358 = vmatpush1.msra.mxu0 0.0
    %1359 = vmatprep.subr.mxu0 0.0
    %1360 = vmatpush1.msra.mxu0 0.0
    %1361 = vmatprep.subr.mxu0 0.0
    %1362 = vmatpush1.msra.mxu0 0.0
    %1363 = vmatprep.subr.mxu0 0.0
    %1364 = vmatpush1.msra.mxu0 0.0
    %1365 = vmatprep.subr.mxu0 0.0
    %1366 = vmatpush1.msra.mxu0 0.0
    %1367 = vmatprep.subr.mxu0 0.0
    %1368 = vmatpush1.msra.mxu0 0.0
    %1369 = vmatprep.subr.mxu0 0.0
    %1370 = vmatpush1.msra.mxu0 0.0
    %1371 = vmatprep.subr.mxu0 0.0
    %1372 = vmatpush1.msra.mxu0 0.0
    %1373 = vmatprep.subr.mxu0 0.0
    %1374 = vmatpush1.msra.mxu0 0.0
    %1375 = vmatprep.subr.mxu0 0.0
    %1376 = vmatpush1.msra.mxu0 0.0
    %1377 = vmatprep.subr.mxu0 0.0
    %1378 = vmatpush1.msra.mxu0 0.0
    %1379 = vmatprep.subr.mxu0 0.0
    %1380 = vmatpush1.msra.mxu0 0.0
    %1381 = vmatprep.mubr.f32.mxu0 0.0
    %1382 = vmatmul.mubr.f32.gmra.mrb[0].mxu0 %v631
    %v1383 = vpop.f32.mrb[0].mxu0
    %v1384 = vadd.f32 0.0, %v1383
    %v1385 = vpop.f32.mrb[0].mxu0
    %1386 = vmatprep.mubr.f32.mxu0 0.0
    %1387 = vmatmul.mubr.f32.gmra.mrb[0].mxu0 %v632
    %v1388 = vpop.f32.mrb[0].mxu0
    %v1389 = vadd.f32 0.0, %v1388
    %v1390 = vpop.f32.mrb[0].mxu0
    %1391 = vmatprep.mubr.f32.mxu0 0.0
    %1392 = vmatmul.mubr.f32.gmra.mrb[0].mxu0 %v633
    %v1393 = vpop.f32.mrb[0].mxu0
    %v1394 = vadd.f32 0.0, %v1393
    %v1395 = vpop.f32.mrb[0].mxu0
    %1396 = vmatprep.mubr.f32.mxu0 0.0
    %1397 = vmatmul.mubr.f32.gmra.mrb[0].mxu0 %v634
    %v1398 = vpop.f32.mrb[0].mxu0
    %v1399 = vadd.f32 0.0, %v1398
    %v1400 = vpop.f32.mrb[0].mxu0
    %1401 = vmatprep.mubr.f32.mxu0 0.0
    %1402 = vmatmul.mubr.f32.gmra.mrb[0].mxu0 %v635
    %v1403 = vpop.f32.mrb[0].mxu0
    %v1404 = vadd.f32 0.0, %v1403
    %v1405 = vpop.f32.mrb[0].mxu0
    %1406 = vmatprep.mubr.f32.mxu0 0.0
    %1407 = vmatmul.mubr.f32.gmra.mrb[0].mxu0 %v636
    %v1408 = vpop.f32.mrb[0].mxu0
    %v1409 = vadd.f32 0.0, %v1408
    %v1410 = vpop.f32.mrb[0].mxu0
    %1411 = vmatprep.mubr.f32.mxu0 0.0
    %1412 = vmatmul.mubr.f32.gmra.mrb[0].mxu0 %v637
    %v1413 = vpop.f32.mrb[0].mxu0
    %v1414 = vadd.f32 0.0, %v1413
    %v1415 = vpop.f32.mrb[0].mxu0
    %1416 = vmatprep.mubr.f32.mxu0 0.0
    %1417 = vmatmul.mubr.f32.gmra.mrb[0].mxu0 %v638
    %v1418 = vpop.f32.mrb[0].mxu0
    %v1419 = vadd.f32 0.0, %v1418
    %v1420 = vpop.f32.mrb[0].mxu0
    %1421 = vdwg.mxu0
    %v1422 = vmul.f32 %v1384, %v639
    %v1423 = vmul.f32 %v1389, %v640
    %v1424 = vmul.f32 %v1394, %v641
    %v1425 = vmul.f32 %v1399, %v642
    %v1426 = vmul.f32 %v1404, %v643
    %v1427 = vmul.f32 %v1409, %v644
    %v1428 = vmul.f32 %v1414, %v645
    %v1429 = vmul.f32 %v1419, %v646
    %1430 = vadd.xlane.f32.xlu0 %v1422
    %v1431 = vpop.xlane.xlu0 %1430
    %1432 = vadd.xlane.f32.xlu0 %v1423
    %v1433 = vpop.xlane.xlu0 %1432
    %1434 = vadd.xlane.f32.xlu0 %v1424
    %v1435 = vpop.xlane.xlu0 %1434
    %1436 = vadd.xlane.f32.xlu0 %v1425
    %v1437 = vpop.xlane.xlu0 %1436
    %1438 = vadd.xlane.f32.xlu0 %v1426
    %v1439 = vpop.xlane.xlu0 %1438
    %1440 = vadd.xlane.f32.xlu0 %v1427
    %v1441 = vpop.xlane.xlu0 %1440
    %1442 = vadd.xlane.f32.xlu0 %v1428
    %v1443 = vpop.xlane.xlu0 %1442
    %1444 = vadd.xlane.f32.xlu0 %v1429
    %v1445 = vpop.xlane.xlu0 %1444
    %vm1446 = vcmp.eq.s32.totalorder %v648, 4
    %v1447 = vsel %vm1446, %v1431, 0.0
    %v1448 = vsel %vm1446, %v1433, 0.0
    %v1449 = vsel %vm1446, %v1435, 0.0
    %v1450 = vsel %vm1446, %v1437, 0.0
    %v1451 = vsel %vm1446, %v1439, 0.0
    %v1452 = vsel %vm1446, %v1441, 0.0
    %v1453 = vsel %vm1446, %v1443, 0.0
    %v1454 = vsel %vm1446, %v1445, 0.0
    %v1455 = vadd.f32 %v1292, %v1447
    %v1456 = vadd.f32 %v1293, %v1448
    %v1457 = vadd.f32 %v1294, %v1449
    %v1458 = vadd.f32 %v1295, %v1450
    %v1459 = vadd.f32 %v1296, %v1451
    %v1460 = vadd.f32 %v1297, %v1452
    %v1461 = vadd.f32 %v1298, %v1453
    %v1462 = vadd.f32 %v1299, %v1454
    %s1463 = scalar_lea.vmem [#allocation6], 640
    %v1464 = vld [vmem:[%s1463] sm:$0xff]
    %v1465 = vld [vmem:[%s1463 + $0x8] sm:$0xff]
    %v1466 = vld [vmem:[%s1463 + $0x10] sm:$0xff]
    %v1467 = vld [vmem:[%s1463 + $0x18] sm:$0xff]
    %v1468 = vld [vmem:[%s1463 + $0x20] sm:$0xff]
    %v1469 = vld [vmem:[%s1463 + $0x28] sm:$0xff]
    %v1470 = vld [vmem:[%s1463 + $0x30] sm:$0xff]
    %v1471 = vld [vmem:[%s1463 + $0x38] sm:$0xff]
    %v1472 = vld [vmem:[%s1463 + $0x40] sm:$0xff]
    %v1473 = vld [vmem:[%s1463 + $0x48] sm:$0xff]
    %v1474 = vld [vmem:[%s1463 + $0x50] sm:$0xff]
    %v1475 = vld [vmem:[%s1463 + $0x58] sm:$0xff]
    %v1476 = vld [vmem:[%s1463 + $0x60] sm:$0xff]
    %v1477 = vld [vmem:[%s1463 + $0x68] sm:$0xff]
    %v1478 = vld [vmem:[%s1463 + $0x70] sm:$0xff]
    %v1479 = vld [vmem:[%s1463 + $0x78] sm:$0xff]
    %1480 = vmatprep.subr.mxu0 0.0
    %1481 = vmatpush1.msra.mxu0 %v1464
    %1482 = vmatprep.subr.mxu0 0.0
    %1483 = vmatpush1.msra.mxu0 %v1465
    %1484 = vmatprep.subr.mxu0 0.0
    %1485 = vmatpush1.msra.mxu0 %v1466
    %1486 = vmatprep.subr.mxu0 0.0
    %1487 = vmatpush1.msra.mxu0 %v1467
    %1488 = vmatprep.subr.mxu0 0.0
    %1489 = vmatpush1.msra.mxu0 %v1468
    %1490 = vmatprep.subr.mxu0 0.0
    %1491 = vmatpush1.msra.mxu0 %v1469
    %1492 = vmatprep.subr.mxu0 0.0
    %1493 = vmatpush1.msra.mxu0 %v1470
    %1494 = vmatprep.subr.mxu0 0.0
    %1495 = vmatpush1.msra.mxu0 %v1471
    %1496 = vmatprep.subr.mxu0 0.0
    %1497 = vmatpush1.msra.mxu0 %v1472
    %1498 = vmatprep.subr.mxu0 0.0
    %1499 = vmatpush1.msra.mxu0 %v1473
    %1500 = vmatprep.subr.mxu0 0.0
    %1501 = vmatpush1.msra.mxu0 %v1474
    %1502 = vmatprep.subr.mxu0 0.0
    %1503 = vmatpush1.msra.mxu0 %v1475
    %1504 = vmatprep.subr.mxu0 0.0
    %1505 = vmatpush1.msra.mxu0 %v1476
    %1506 = vmatprep.subr.mxu0 0.0
    %1507 = vmatpush1.msra.mxu0 %v1477
    %1508 = vmatprep.subr.mxu0 0.0
    %1509 = vmatpush1.msra.mxu0 %v1478
    %1510 = vmatprep.subr.mxu0 0.0
    %1511 = vmatpush1.msra.mxu0 %v1479
    %1512 = vmatprep.subr.mxu0 0.0
    %1513 = vmatpush1.msra.mxu0 0.0
    %1514 = vmatprep.subr.mxu0 0.0
    %1515 = vmatpush1.msra.mxu0 0.0
    %1516 = vmatprep.subr.mxu0 0.0
    %1517 = vmatpush1.msra.mxu0 0.0
    %1518 = vmatprep.subr.mxu0 0.0
    %1519 = vmatpush1.msra.mxu0 0.0
    %1520 = vmatprep.subr.mxu0 0.0
    %1521 = vmatpush1.msra.mxu0 0.0
    %1522 = vmatprep.subr.mxu0 0.0
    %1523 = vmatpush1.msra.mxu0 0.0
    %1524 = vmatprep.subr.mxu0 0.0
    %1525 = vmatpush1.msra.mxu0 0.0
    %1526 = vmatprep.subr.mxu0 0.0
    %1527 = vmatpush1.msra.mxu0 0.0
    %1528 = vmatprep.subr.mxu0 0.0
    %1529 = vmatpush1.msra.mxu0 0.0
    %1530 = vmatprep.subr.mxu0 0.0
    %1531 = vmatpush1.msra.mxu0 0.0
    %1532 = vmatprep.subr.mxu0 0.0
    %1533 = vmatpush1.msra.mxu0 0.0
    %1534 = vmatprep.subr.mxu0 0.0
    %1535 = vmatpush1.msra.mxu0 0.0
    %1536 = vmatprep.subr.mxu0 0.0
    %1537 = vmatpush1.msra.mxu0 0.0
    %1538 = vmatprep.subr.mxu0 0.0
    %1539 = vmatpush1.msra.mxu0 0.0
    %1540 = vmatprep.subr.mxu0 0.0
    %1541 = vmatpush1.msra.mxu0 0.0
    %1542 = vmatprep.subr.mxu0 0.0
    %1543 = vmatpush1.msra.mxu0 0.0
    %1544 = vmatprep.mubr.f32.mxu0 0.0
    %1545 = vmatmul.mubr.f32.gmra.mrb[0].mxu0 %v631
    %v1546 = vpop.f32.mrb[0].mxu0
    %v1547 = vadd.f32 0.0, %v1546
    %v1548 = vpop.f32.mrb[0].mxu0
    %1549 = vmatprep.mubr.f32.mxu0 0.0
    %1550 = vmatmul.mubr.f32.gmra.mrb[0].mxu0 %v632
    %v1551 = vpop.f32.mrb[0].mxu0
    %v1552 = vadd.f32 0.0, %v1551
    %v1553 = vpop.f32.mrb[0].mxu0
    %1554 = vmatprep.mubr.f32.mxu0 0.0
    %1555 = vmatmul.mubr.f32.gmra.mrb[0].mxu0 %v633
    %v1556 = vpop.f32.mrb[0].mxu0
    %v1557 = vadd.f32 0.0, %v1556
    %v1558 = vpop.f32.mrb[0].mxu0
    %1559 = vmatprep.mubr.f32.mxu0 0.0
    %1560 = vmatmul.mubr.f32.gmra.mrb[0].mxu0 %v634
    %v1561 = vpop.f32.mrb[0].mxu0
    %v1562 = vadd.f32 0.0, %v1561
    %v1563 = vpop.f32.mrb[0].mxu0
    %1564 = vmatprep.mubr.f32.mxu0 0.0
    %1565 = vmatmul.mubr.f32.gmra.mrb[0].mxu0 %v635
    %v1566 = vpop.f32.mrb[0].mxu0
    %v1567 = vadd.f32 0.0, %v1566
    %v1568 = vpop.f32.mrb[0].mxu0
    %1569 = vmatprep.mubr.f32.mxu0 0.0
    %1570 = vmatmul.mubr.f32.gmra.mrb[0].mxu0 %v636
    %v1571 = vpop.f32.mrb[0].mxu0
    %v1572 = vadd.f32 0.0, %v1571
    %v1573 = vpop.f32.mrb[0].mxu0
    %1574 = vmatprep.mubr.f32.mxu0 0.0
    %1575 = vmatmul.mubr.f32.gmra.mrb[0].mxu0 %v637
    %v1576 = vpop.f32.mrb[0].mxu0
    %v1577 = vadd.f32 0.0, %v1576
    %v1578 = vpop.f32.mrb[0].mxu0
    %1579 = vmatprep.mubr.f32.mxu0 0.0
    %1580 = vmatmul.mubr.f32.gmra.mrb[0].mxu0 %v638
    %v1581 = vpop.f32.mrb[0].mxu0
    %v1582 = vadd.f32 0.0, %v1581
    %v1583 = vpop.f32.mrb[0].mxu0
    %1584 = vdwg.mxu0
    %v1585 = vmul.f32 %v1547, %v639
    %v1586 = vmul.f32 %v1552, %v640
    %v1587 = vmul.f32 %v1557, %v641
    %v1588 = vmul.f32 %v1562, %v642
    %v1589 = vmul.f32 %v1567, %v643
    %v1590 = vmul.f32 %v1572, %v644
    %v1591 = vmul.f32 %v1577, %v645
    %v1592 = vmul.f32 %v1582, %v646
    %1593 = vadd.xlane.f32.xlu0 %v1585
    %v1594 = vpop.xlane.xlu0 %1593
    %1595 = vadd.xlane.f32.xlu0 %v1586
    %v1596 = vpop.xlane.xlu0 %1595
    %1597 = vadd.xlane.f32.xlu0 %v1587
    %v1598 = vpop.xlane.xlu0 %1597
    %1599 = vadd.xlane.f32.xlu0 %v1588
    %v1600 = vpop.xlane.xlu0 %1599
    %1601 = vadd.xlane.f32.xlu0 %v1589
    %v1602 = vpop.xlane.xlu0 %1601
    %1603 = vadd.xlane.f32.xlu0 %v1590
    %v1604 = vpop.xlane.xlu0 %1603
    %1605 = vadd.xlane.f32.xlu0 %v1591
    %v1606 = vpop.xlane.xlu0 %1605
    %1607 = vadd.xlane.f32.xlu0 %v1592
    %v1608 = vpop.xlane.xlu0 %1607
    %vm1609 = vcmp.eq.s32.totalorder %v648, 5
    %v1610 = vsel %vm1609, %v1594, 0.0
    %v1611 = vsel %vm1609, %v1596, 0.0
    %v1612 = vsel %vm1609, %v1598, 0.0
    %v1613 = vsel %vm1609, %v1600, 0.0
    %v1614 = vsel %vm1609, %v1602, 0.0
    %v1615 = vsel %vm1609, %v1604, 0.0
    %v1616 = vsel %vm1609, %v1606, 0.0
    %v1617 = vsel %vm1609, %v1608, 0.0
    %v1618 = vadd.f32 %v1455, %v1610
    %v1619 = vadd.f32 %v1456, %v1611
    %v1620 = vadd.f32 %v1457, %v1612
    %v1621 = vadd.f32 %v1458, %v1613
    %v1622 = vadd.f32 %v1459, %v1614
    %v1623 = vadd.f32 %v1460, %v1615
    %v1624 = vadd.f32 %v1461, %v1616
    %v1625 = vadd.f32 %v1462, %v1617
    %s1626 = scalar_lea.vmem [#allocation6], 768
    %v1627 = vld [vmem:[%s1626] sm:$0xff]
    %v1628 = vld [vmem:[%s1626 + $0x8] sm:$0xff]
    %v1629 = vld [vmem:[%s1626 + $0x10] sm:$0xff]
    %v1630 = vld [vmem:[%s1626 + $0x18] sm:$0xff]
    %v1631 = vld [vmem:[%s1626 + $0x20] sm:$0xff]
    %v1632 = vld [vmem:[%s1626 + $0x28] sm:$0xff]
    %v1633 = vld [vmem:[%s1626 + $0x30] sm:$0xff]
    %v1634 = vld [vmem:[%s1626 + $0x38] sm:$0xff]
    %v1635 = vld [vmem:[%s1626 + $0x40] sm:$0xff]
    %v1636 = vld [vmem:[%s1626 + $0x48] sm:$0xff]
    %v1637 = vld [vmem:[%s1626 + $0x50] sm:$0xff]
    %v1638 = vld [vmem:[%s1626 + $0x58] sm:$0xff]
    %v1639 = vld [vmem:[%s1626 + $0x60] sm:$0xff]
    %v1640 = vld [vmem:[%s1626 + $0x68] sm:$0xff]
    %v1641 = vld [vmem:[%s1626 + $0x70] sm:$0xff]
    %v1642 = vld [vmem:[%s1626 + $0x78] sm:$0xff]
    %1643 = vmatprep.subr.mxu0 0.0
    %1644 = vmatpush1.msra.mxu0 %v1627
    %1645 = vmatprep.subr.mxu0 0.0
    %1646 = vmatpush1.msra.mxu0 %v1628
    %1647 = vmatprep.subr.mxu0 0.0
    %1648 = vmatpush1.msra.mxu0 %v1629
    %1649 = vmatprep.subr.mxu0 0.0
    %1650 = vmatpush1.msra.mxu0 %v1630
    %1651 = vmatprep.subr.mxu0 0.0
    %1652 = vmatpush1.msra.mxu0 %v1631
    %1653 = vmatprep.subr.mxu0 0.0
    %1654 = vmatpush1.msra.mxu0 %v1632
    %1655 = vmatprep.subr.mxu0 0.0
    %1656 = vmatpush1.msra.mxu0 %v1633
    %1657 = vmatprep.subr.mxu0 0.0
    %1658 = vmatpush1.msra.mxu0 %v1634
    %1659 = vmatprep.subr.mxu0 0.0
    %1660 = vmatpush1.msra.mxu0 %v1635
    %1661 = vmatprep.subr.mxu0 0.0
    %1662 = vmatpush1.msra.mxu0 %v1636
    %1663 = vmatprep.subr.mxu0 0.0
    %1664 = vmatpush1.msra.mxu0 %v1637
    %1665 = vmatprep.subr.mxu0 0.0
    %1666 = vmatpush1.msra.mxu0 %v1638
    %1667 = vmatprep.subr.mxu0 0.0
    %1668 = vmatpush1.msra.mxu0 %v1639
    %1669 = vmatprep.subr.mxu0 0.0
    %1670 = vmatpush1.msra.mxu0 %v1640
    %1671 = vmatprep.subr.mxu0 0.0
    %1672 = vmatpush1.msra.mxu0 %v1641
    %1673 = vmatprep.subr.mxu0 0.0
    %1674 = vmatpush1.msra.mxu0 %v1642
    %1675 = vmatprep.subr.mxu0 0.0
    %1676 = vmatpush1.msra.mxu0 0.0
    %1677 = vmatprep.subr.mxu0 0.0
    %1678 = vmatpush1.msra.mxu0 0.0
    %1679 = vmatprep.subr.mxu0 0.0
    %1680 = vmatpush1.msra.mxu0 0.0
    %1681 = vmatprep.subr.mxu0 0.0
    %1682 = vmatpush1.msra.mxu0 0.0
    %1683 = vmatprep.subr.mxu0 0.0
    %1684 = vmatpush1.msra.mxu0 0.0
    %1685 = vmatprep.subr.mxu0 0.0
    %1686 = vmatpush1.msra.mxu0 0.0
    %1687 = vmatprep.subr.mxu0 0.0
    %1688 = vmatpush1.msra.mxu0 0.0
    %1689 = vmatprep.subr.mxu0 0.0
    %1690 = vmatpush1.msra.mxu0 0.0
    %1691 = vmatprep.subr.mxu0 0.0
    %1692 = vmatpush1.msra.mxu0 0.0
    %1693 = vmatprep.subr.mxu0 0.0
    %1694 = vmatpush1.msra.mxu0 0.0
    %1695 = vmatprep.subr.mxu0 0.0
    %1696 = vmatpush1.msra.mxu0 0.0
    %1697 = vmatprep.subr.mxu0 0.0
    %1698 = vmatpush1.msra.mxu0 0.0
    %1699 = vmatprep.subr.mxu0 0.0
    %1700 = vmatpush1.msra.mxu0 0.0
    %1701 = vmatprep.subr.mxu0 0.0
    %1702 = vmatpush1.msra.mxu0 0.0
    %1703 = vmatprep.subr.mxu0 0.0
    %1704 = vmatpush1.msra.mxu0 0.0
    %1705 = vmatprep.subr.mxu0 0.0
    %1706 = vmatpush1.msra.mxu0 0.0
    %1707 = vmatprep.mubr.f32.mxu0 0.0
    %1708 = vmatmul.mubr.f32.gmra.mrb[0].mxu0 %v631
    %v1709 = vpop.f32.mrb[0].mxu0
    %v1710 = vadd.f32 0.0, %v1709
    %v1711 = vpop.f32.mrb[0].mxu0
    %1712 = vmatprep.mubr.f32.mxu0 0.0
    %1713 = vmatmul.mubr.f32.gmra.mrb[0].mxu0 %v632
    %v1714 = vpop.f32.mrb[0].mxu0
    %v1715 = vadd.f32 0.0, %v1714
    %v1716 = vpop.f32.mrb[0].mxu0
    %1717 = vmatprep.mubr.f32.mxu0 0.0
    %1718 = vmatmul.mubr.f32.gmra.mrb[0].mxu0 %v633
    %v1719 = vpop.f32.mrb[0].mxu0
    %v1720 = vadd.f32 0.0, %v1719
    %v1721 = vpop.f32.mrb[0].mxu0
    %1722 = vmatprep.mubr.f32.mxu0 0.0
    %1723 = vmatmul.mubr.f32.gmra.mrb[0].mxu0 %v634
    %v1724 = vpop.f32.mrb[0].mxu0
    %v1725 = vadd.f32 0.0, %v1724
    %v1726 = vpop.f32.mrb[0].mxu0
    %1727 = vmatprep.mubr.f32.mxu0 0.0
    %1728 = vmatmul.mubr.f32.gmra.mrb[0].mxu0 %v635
    %v1729 = vpop.f32.mrb[0].mxu0
    %v1730 = vadd.f32 0.0, %v1729
    %v1731 = vpop.f32.mrb[0].mxu0
    %1732 = vmatprep.mubr.f32.mxu0 0.0
    %1733 = vmatmul.mubr.f32.gmra.mrb[0].mxu0 %v636
    %v1734 = vpop.f32.mrb[0].mxu0
    %v1735 = vadd.f32 0.0, %v1734
    %v1736 = vpop.f32.mrb[0].mxu0
    %1737 = vmatprep.mubr.f32.mxu0 0.0
    %1738 = vmatmul.mubr.f32.gmra.mrb[0].mxu0 %v637
    %v1739 = vpop.f32.mrb[0].mxu0
    %v1740 = vadd.f32 0.0, %v1739
    %v1741 = vpop.f32.mrb[0].mxu0
    %1742 = vmatprep.mubr.f32.mxu0 0.0
    %1743 = vmatmul.mubr.f32.gmra.mrb[0].mxu0 %v638
    %v1744 = vpop.f32.mrb[0].mxu0
    %v1745 = vadd.f32 0.0, %v1744
    %v1746 = vpop.f32.mrb[0].mxu0
    %1747 = vdwg.mxu0
    %v1748 = vmul.f32 %v1710, %v639
    %v1749 = vmul.f32 %v1715, %v640
    %v1750 = vmul.f32 %v1720, %v641
    %v1751 = vmul.f32 %v1725, %v642
    %v1752 = vmul.f32 %v1730, %v643
    %v1753 = vmul.f32 %v1735, %v644
    %v1754 = vmul.f32 %v1740, %v645
    %v1755 = vmul.f32 %v1745, %v646
    %1756 = vadd.xlane.f32.xlu0 %v1748
    %v1757 = vpop.xlane.xlu0 %1756
    %1758 = vadd.xlane.f32.xlu0 %v1749
    %v1759 = vpop.xlane.xlu0 %1758
    %1760 = vadd.xlane.f32.xlu0 %v1750
    %v1761 = vpop.xlane.xlu0 %1760
    %1762 = vadd.xlane.f32.xlu0 %v1751
    %v1763 = vpop.xlane.xlu0 %1762
    %1764 = vadd.xlane.f32.xlu0 %v1752
    %v1765 = vpop.xlane.xlu0 %1764
    %1766 = vadd.xlane.f32.xlu0 %v1753
    %v1767 = vpop.xlane.xlu0 %1766
    %1768 = vadd.xlane.f32.xlu0 %v1754
    %v1769 = vpop.xlane.xlu0 %1768
    %1770 = vadd.xlane.f32.xlu0 %v1755
    %v1771 = vpop.xlane.xlu0 %1770
    %vm1772 = vcmp.eq.s32.totalorder %v648, 6
    %v1773 = vsel %vm1772, %v1757, 0.0
    %v1774 = vsel %vm1772, %v1759, 0.0
    %v1775 = vsel %vm1772, %v1761, 0.0
    %v1776 = vsel %vm1772, %v1763, 0.0
    %v1777 = vsel %vm1772, %v1765, 0.0
    %v1778 = vsel %vm1772, %v1767, 0.0
    %v1779 = vsel %vm1772, %v1769, 0.0
    %v1780 = vsel %vm1772, %v1771, 0.0
    %v1781 = vadd.f32 %v1618, %v1773
    %v1782 = vadd.f32 %v1619, %v1774
    %v1783 = vadd.f32 %v1620, %v1775
    %v1784 = vadd.f32 %v1621, %v1776
    %v1785 = vadd.f32 %v1622, %v1777
    %v1786 = vadd.f32 %v1623, %v1778
    %v1787 = vadd.f32 %v1624, %v1779
    %v1788 = vadd.f32 %v1625, %v1780
    %s1789 = scalar_lea.vmem [#allocation6], 896
    %v1790 = vld [vmem:[%s1789] sm:$0xff]
    %v1791 = vld [vmem:[%s1789 + $0x8] sm:$0xff]
    %v1792 = vld [vmem:[%s1789 + $0x10] sm:$0xff]
    %v1793 = vld [vmem:[%s1789 + $0x18] sm:$0xff]
    %v1794 = vld [vmem:[%s1789 + $0x20] sm:$0xff]
    %v1795 = vld [vmem:[%s1789 + $0x28] sm:$0xff]
    %v1796 = vld [vmem:[%s1789 + $0x30] sm:$0xff]
    %v1797 = vld [vmem:[%s1789 + $0x38] sm:$0xff]
    %v1798 = vld [vmem:[%s1789 + $0x40] sm:$0xff]
    %v1799 = vld [vmem:[%s1789 + $0x48] sm:$0xff]
    %v1800 = vld [vmem:[%s1789 + $0x50] sm:$0xff]
    %v1801 = vld [vmem:[%s1789 + $0x58] sm:$0xff]
    %v1802 = vld [vmem:[%s1789 + $0x60] sm:$0xff]
    %v1803 = vld [vmem:[%s1789 + $0x68] sm:$0xff]
    %v1804 = vld [vmem:[%s1789 + $0x70] sm:$0xff]
    %v1805 = vld [vmem:[%s1789 + $0x78] sm:$0xff]
    %1806 = vmatprep.subr.mxu0 0.0
    %1807 = vmatpush1.msra.mxu0 %v1790
    %1808 = vmatprep.subr.mxu0 0.0
    %1809 = vmatpush1.msra.mxu0 %v1791
    %1810 = vmatprep.subr.mxu0 0.0
    %1811 = vmatpush1.msra.mxu0 %v1792
    %1812 = vmatprep.subr.mxu0 0.0
    %1813 = vmatpush1.msra.mxu0 %v1793
    %1814 = vmatprep.subr.mxu0 0.0
    %1815 = vmatpush1.msra.mxu0 %v1794
    %1816 = vmatprep.subr.mxu0 0.0
    %1817 = vmatpush1.msra.mxu0 %v1795
    %1818 = vmatprep.subr.mxu0 0.0
    %1819 = vmatpush1.msra.mxu0 %v1796
    %1820 = vmatprep.subr.mxu0 0.0
    %1821 = vmatpush1.msra.mxu0 %v1797
    %1822 = vmatprep.subr.mxu0 0.0
    %1823 = vmatpush1.msra.mxu0 %v1798
    %1824 = vmatprep.subr.mxu0 0.0
    %1825 = vmatpush1.msra.mxu0 %v1799
    %1826 = vmatprep.subr.mxu0 0.0
    %1827 = vmatpush1.msra.mxu0 %v1800
    %1828 = vmatprep.subr.mxu0 0.0
    %1829 = vmatpush1.msra.mxu0 %v1801
    %1830 = vmatprep.subr.mxu0 0.0
    %1831 = vmatpush1.msra.mxu0 %v1802
    %1832 = vmatprep.subr.mxu0 0.0
    %1833 = vmatpush1.msra.mxu0 %v1803
    %1834 = vmatprep.subr.mxu0 0.0
    %1835 = vmatpush1.msra.mxu0 %v1804
    %1836 = vmatprep.subr.mxu0 0.0
    %1837 = vmatpush1.msra.mxu0 %v1805
    %1838 = vmatprep.subr.mxu0 0.0
    %1839 = vmatpush1.msra.mxu0 0.0
    %1840 = vmatprep.subr.mxu0 0.0
    %1841 = vmatpush1.msra.mxu0 0.0
    %1842 = vmatprep.subr.mxu0 0.0
    %1843 = vmatpush1.msra.mxu0 0.0
    %1844 = vmatprep.subr.mxu0 0.0
    %1845 = vmatpush1.msra.mxu0 0.0
    %1846 = vmatprep.subr.mxu0 0.0
    %1847 = vmatpush1.msra.mxu0 0.0
    %1848 = vmatprep.subr.mxu0 0.0
    %1849 = vmatpush1.msra.mxu0 0.0
    %1850 = vmatprep.subr.mxu0 0.0
    %1851 = vmatpush1.msra.mxu0 0.0
    %1852 = vmatprep.subr.mxu0 0.0
    %1853 = vmatpush1.msra.mxu0 0.0
    %1854 = vmatprep.subr.mxu0 0.0
    %1855 = vmatpush1.msra.mxu0 0.0
    %1856 = vmatprep.subr.mxu0 0.0
    %1857 = vmatpush1.msra.mxu0 0.0
    %1858 = vmatprep.subr.mxu0 0.0
    %1859 = vmatpush1.msra.mxu0 0.0
    %1860 = vmatprep.subr.mxu0 0.0
    %1861 = vmatpush1.msra.mxu0 0.0
    %1862 = vmatprep.subr.mxu0 0.0
    %1863 = vmatpush1.msra.mxu0 0.0
    %1864 = vmatprep.subr.mxu0 0.0
    %1865 = vmatpush1.msra.mxu0 0.0
    %1866 = vmatprep.subr.mxu0 0.0
    %1867 = vmatpush1.msra.mxu0 0.0
    %1868 = vmatprep.subr.mxu0 0.0
    %1869 = vmatpush1.msra.mxu0 0.0
    %1870 = vmatprep.mubr.f32.mxu0 0.0
    %1871 = vmatmul.mubr.f32.gmra.mrb[0].mxu0 %v631
    %v1872 = vpop.f32.mrb[0].mxu0
    %v1873 = vadd.f32 0.0, %v1872
    %v1874 = vpop.f32.mrb[0].mxu0
    %1875 = vmatprep.mubr.f32.mxu0 0.0
    %1876 = vmatmul.mubr.f32.gmra.mrb[0].mxu0 %v632
    %v1877 = vpop.f32.mrb[0].mxu0
    %v1878 = vadd.f32 0.0, %v1877
    %v1879 = vpop.f32.mrb[0].mxu0
    %1880 = vmatprep.mubr.f32.mxu0 0.0
    %1881 = vmatmul.mubr.f32.gmra.mrb[0].mxu0 %v633
    %v1882 = vpop.f32.mrb[0].mxu0
    %v1883 = vadd.f32 0.0, %v1882
    %v1884 = vpop.f32.mrb[0].mxu0
    %1885 = vmatprep.mubr.f32.mxu0 0.0
    %1886 = vmatmul.mubr.f32.gmra.mrb[0].mxu0 %v634
    %v1887 = vpop.f32.mrb[0].mxu0
    %v1888 = vadd.f32 0.0, %v1887
    %v1889 = vpop.f32.mrb[0].mxu0
    %1890 = vmatprep.mubr.f32.mxu0 0.0
    %1891 = vmatmul.mubr.f32.gmra.mrb[0].mxu0 %v635
    %v1892 = vpop.f32.mrb[0].mxu0
    %v1893 = vadd.f32 0.0, %v1892
    %v1894 = vpop.f32.mrb[0].mxu0
    %1895 = vmatprep.mubr.f32.mxu0 0.0
    %1896 = vmatmul.mubr.f32.gmra.mrb[0].mxu0 %v636
    %v1897 = vpop.f32.mrb[0].mxu0
    %v1898 = vadd.f32 0.0, %v1897
    %v1899 = vpop.f32.mrb[0].mxu0
    %1900 = vmatprep.mubr.f32.mxu0 0.0
    %1901 = vmatmul.mubr.f32.gmra.mrb[0].mxu0 %v637
    %v1902 = vpop.f32.mrb[0].mxu0
    %v1903 = vadd.f32 0.0, %v1902
    %v1904 = vpop.f32.mrb[0].mxu0
    %1905 = vmatprep.mubr.f32.mxu0 0.0
    %1906 = vmatmul.mubr.f32.gmra.mrb[0].mxu0 %v638
    %v1907 = vpop.f32.mrb[0].mxu0
    %v1908 = vadd.f32 0.0, %v1907
    %v1909 = vpop.f32.mrb[0].mxu0
    %1910 = vdwg.mxu0
    %v1911 = vmul.f32 %v1873, %v639
    %v1912 = vmul.f32 %v1878, %v640
    %v1913 = vmul.f32 %v1883, %v641
    %v1914 = vmul.f32 %v1888, %v642
    %v1915 = vmul.f32 %v1893, %v643
    %v1916 = vmul.f32 %v1898, %v644
    %v1917 = vmul.f32 %v1903, %v645
    %v1918 = vmul.f32 %v1908, %v646
    %1919 = vadd.xlane.f32.xlu0 %v1911
    %v1920 = vpop.xlane.xlu0 %1919
    %1921 = vadd.xlane.f32.xlu0 %v1912
    %v1922 = vpop.xlane.xlu0 %1921
    %1923 = vadd.xlane.f32.xlu0 %v1913
    %v1924 = vpop.xlane.xlu0 %1923
    %1925 = vadd.xlane.f32.xlu0 %v1914
    %v1926 = vpop.xlane.xlu0 %1925
    %1927 = vadd.xlane.f32.xlu0 %v1915
    %v1928 = vpop.xlane.xlu0 %1927
    %1929 = vadd.xlane.f32.xlu0 %v1916
    %v1930 = vpop.xlane.xlu0 %1929
    %1931 = vadd.xlane.f32.xlu0 %v1917
    %v1932 = vpop.xlane.xlu0 %1931
    %1933 = vadd.xlane.f32.xlu0 %v1918
    %v1934 = vpop.xlane.xlu0 %1933
    %vm1935 = vcmp.eq.s32.totalorder %v648, 7
    %v1936 = vsel %vm1935, %v1920, 0.0
    %v1937 = vsel %vm1935, %v1922, 0.0
    %v1938 = vsel %vm1935, %v1924, 0.0
    %v1939 = vsel %vm1935, %v1926, 0.0
    %v1940 = vsel %vm1935, %v1928, 0.0
    %v1941 = vsel %vm1935, %v1930, 0.0
    %v1942 = vsel %vm1935, %v1932, 0.0
    %v1943 = vsel %vm1935, %v1934, 0.0
    %v1944 = vadd.f32 %v1781, %v1936
    %v1945 = vadd.f32 %v1782, %v1937
    %v1946 = vadd.f32 %v1783, %v1938
    %v1947 = vadd.f32 %v1784, %v1939
    %v1948 = vadd.f32 %v1785, %v1940
    %v1949 = vadd.f32 %v1786, %v1941
    %v1950 = vadd.f32 %v1787, %v1942
    %v1951 = vadd.f32 %v1788, %v1943
    %vm1952 = vcmask 64512
    %1953 = vst.msk [vmem:[%s5] sm:$0xff] %vm1952, %v1944
    %1954 = vst.msk [vmem:[%s5 + $0x8] sm:$0xff] %vm1952, %v1945
    %1955 = vst.msk [vmem:[%s5 + $0x10] sm:$0xff] %vm1952, %v1946
    %1956 = vst.msk [vmem:[%s5 + $0x18] sm:$0xff] %vm1952, %v1947
    %1957 = vst.msk [vmem:[%s5 + $0x20] sm:$0xff] %vm1952, %v1948
    %1958 = vst.msk [vmem:[%s5 + $0x28] sm:$0xff] %vm1952, %v1949
    %1959 = vst.msk [vmem:[%s5 + $0x30] sm:$0xff] %vm1952, %v1950
    %1960 = vst.msk [vmem:[%s5 + $0x38] sm:$0xff] %vm1952, %v1951
    // Predicated region
    $region30: #{tpu_custom_call.1} parent=1 // pred_check
      %p1961 = pneg %p37
    $region31: #{tpu_custom_call.1} parent=1 // pred_check_branch
      %1963 = sbr.rel (%p1961) target = $region33
    $region32: #{tpu_custom_call.1} parent=1 // pred_region
      %1964 = vst [vmem:[#allocation9] sm:$0xff] %v627
    $region33: #{tpu_custom_call.1} parent=1 // pred_fallthru
      _
    // Predicated region
    $region34: #{tpu_custom_call.1} parent=1 // pred_check
      _
    $region35: #{tpu_custom_call.1} parent=1 // pred_check_branch
      %1966 = sbr.rel (0) target = $region37
    $region36: #{tpu_custom_call.1} parent=1 // pred_region
      _
    $region37: #{tpu_custom_call.1} parent=1 // pred_fallthru
      _
    // Predicated region
    $region38: #{tpu_custom_call.1} parent=1 // pred_check
      _
    $region39: #{tpu_custom_call.1} parent=1 // pred_check_branch
      %1968 = sbr.rel (0) target = $region41
    $region40: #{tpu_custom_call.1} parent=1 // pred_region
      %s1970 = ssub.s32 128, 128
      %1971 = vsyncadd [#allocation8], %s1970
      %s1973 = sshll.u32 [#allocation9], 4
      %s1974 = int_to_ptr.vmem [resolvable:$true] %s1973
      %1976 = dma.vmem_to_hbm [thread:$0]  %s1974, 128, %s6, [#allocation8]
    $region41: #{tpu_custom_call.1} parent=1 // pred_fallthru
      _
    // Predicated region
    $region42: #{tpu_custom_call.1} parent=1 // pred_check
      _
    $region43: #{tpu_custom_call.1} parent=1 // pred_check_branch
      %1978 = sbr.rel (0) target = $region45
    $region44: #{tpu_custom_call.1} parent=1 // pred_region
      _
    $region45: #{tpu_custom_call.1} parent=1 // pred_fallthru
      _
    // Predicated region
    $region46: #{tpu_custom_call.1} parent=1 // pred_check
      _
    $region47: #{tpu_custom_call.1} parent=1 // pred_check_branch
      %1980 = sbr.rel (0) target = $region49
    $region48: #{tpu_custom_call.1} parent=1 // pred_region
      %1981 = dma.done [#allocation8], 128
    $region49: #{tpu_custom_call.1} parent=1 // pred_fallthru
      _
    %1982 = vsyncpa [#allocation7], 1
    %1983 = vsyncpa [#allocation8], 1

</llo_original>
